<compile_context>
chip_gen: v6e
topology: v6e:2x2x1
jax: 0.10.0
libtpu: 0.0.40
codegen_flags: <defaults>
</compile_context>

<pallas_src>
import functools

import jax
import jax.numpy as jnp
from jax import lax
from jax.experimental import pallas as pl
from jax.experimental.pallas import tpu as pltpu

# dot_general dims: contract last dim of lhs with last dim of rhs (x @ W.T).
_NT_DIMS = (((1,), (1,)), ((), ()))


def _mlp_kernel(x_ref, w1_ref, b1_ref, w2_ref, b2_ref, o_ref):
    # Cast activations to the weight dtype (bf16) so the MXU runs its native
    # bf16 path; accumulate in f32.
    x = x_ref[...].astype(w1_ref.dtype)                       # [bm, IN]
    # fc1: [bm, IN] x [H, IN] contracting IN  -> [bm, H]
    h = lax.dot_general(x, w1_ref[...], _NT_DIMS,
                        preferred_element_type=jnp.float32)
    h = jnp.maximum(h + b1_ref[...], 0.0)                     # bias (f32) + ReLU
    # fc2: [bm, H] x [OUT_PAD, H] contracting H -> [bm, OUT_PAD] (lane-dense)
    out = lax.dot_general(h.astype(w2_ref.dtype), w2_ref[...], _NT_DIMS,
                          preferred_element_type=jnp.float32)
    o_ref[...] = (out + b2_ref[...]).astype(o_ref.dtype)


def _round_up(x, m):
    return (x + m - 1) // m * m


def _pick_block_m(batch):
    # Multiple of 8 (f32 sublane), capped at 512 so double-buffered x tiles
    # (512 x 3072 x 2B x 2buf = 6 MiB) stay well inside every chip's scoped VMEM.
    return max(8, min(512, _round_up(batch, 8)))


def prepare_params(w1, b1, w2, b2, *, compute_dtype=jnp.bfloat16, lane=128):
    """One-time model prep (do NOT call per forward pass).

    Keeps PyTorch nn.Linear layout ([out, in]); casts weights to bf16 and
    zero-pads fc2's output dim up to a multiple of 128 for lane-dense stores.
    """
    H, IN = w1.shape
    OUT = w2.shape[0]
    out_pad = max(lane, _round_up(OUT, lane))

    w1p = w1.astype(compute_dtype)                              # [H, IN]
    w2p = jnp.zeros((out_pad, H), compute_dtype).at[:OUT, :].set(
        w2.astype(compute_dtype))                               # [OUT_PAD, H]
    b1p = b1.reshape(1, H).astype(jnp.float32)                  # [1, H]
    b2p = jnp.zeros((1, out_pad), jnp.float32).at[:, :OUT].set(
        b2.astype(jnp.float32))                                 # [1, OUT_PAD]
    return (w1p, b1p, w2p, b2p), OUT


@functools.partial(jax.jit, static_argnames=("out_features", "block_m"))
def mlp_forward(x, w1p, b1p, w2p, b2p, *, out_features, block_m=None):
    """fc2(relu(fc1(x))) with nn.Linear semantics (y = x @ W.T + b).

    x:   [B, IN] float32 (cast to bf16 in-kernel)
    w1p: [H, IN] bf16, b1p: [1, H] f32
    w2p: [OUT_PAD, H] bf16 (zero-padded rows), b2p: [1, OUT_PAD] f32
    returns [B, out_features]
    """
    B, IN = x.shape
    H = w1p.shape[0]
    OUT_PAD = w2p.shape[0]

    if block_m is None:
        block_m = _pick_block_m(B)
    grid = (pl.cdiv(B, block_m),)

    out_padded = pl.pallas_call(
        _mlp_kernel,
        out_shape=jax.ShapeDtypeStruct((B, OUT_PAD), x.dtype),
        grid_spec=pltpu.PrefetchScalarGridSpec(
            num_scalar_prefetch=0,
            grid=grid,
            in_specs=[
                pl.BlockSpec((block_m, IN), lambda i: (i, 0)),   # x tile
                pl.BlockSpec((H, IN), lambda i: (0, 0)),         # W1 (resident)
                pl.BlockSpec((1, H), lambda i: (0, 0)),          # b1
                pl.BlockSpec((OUT_PAD, H), lambda i: (0, 0)),    # W2 padded (resident)
                pl.BlockSpec((1, OUT_PAD), lambda i: (0, 0)),    # b2 padded
            ],
            out_specs=pl.BlockSpec((block_m, OUT_PAD), lambda i: (i, 0)),
        ),
        compiler_params=pltpu.CompilerParams(
            dimension_semantics=("parallel",),
        ),
    )(x, w1p, b1p, w2p, b2p)

    # Drop the zero-padded output columns (cheap XLA slice outside the kernel).
    return out_padded[:, :out_features]


def _reference(x, w1p, b1p, w2p, b2p, *, out_features):
    # Matches the kernel's numerics: bf16 operands, f32 accumulation.
    xf = x.astype(jnp.bfloat16).astype(jnp.float32)
    h = jnp.maximum(xf @ w1p.astype(jnp.float32).T + b1p, 0.0)
    hb = h.astype(jnp.bfloat16).astype(jnp.float32)
    out = hb @ w2p.astype(jnp.float32).T + b2p
    return out[:, :out_features]


if __name__ == "__main__":
    # Module-implied shapes: input_size = 32*32*3 = 3072, hidden_size = 256,
    # output_size = len(classes) = 10 (CIFAR-10 style).
    input_size = 32 * 32 * 3
    hidden_size = 256
    output_size = 10
    std = 0.01

    key = jax.random.PRNGKey(0)
    kx, kw1, kb1, kw2, kb2, kx2 = jax.random.split(key, 6)

    # init.normal_(weight, std=std); biases keep nn.Linear's default uniform
    # (-1/sqrt(fan_in), 1/sqrt(fan_in)) — seeded deterministically here.
    w1 = std * jax.random.normal(kw1, (hidden_size, input_size), dtype=jnp.float32)
    b1 = jax.random.uniform(kb1, (hidden_size,), dtype=jnp.float32,
                            minval=-1.0 / jnp.sqrt(input_size),
                            maxval=1.0 / jnp.sqrt(input_size))
    w2 = std * jax.random.normal(kw2, (output_size, hidden_size), dtype=jnp.float32)
    b2 = jax.random.uniform(kb2, (output_size,), dtype=jnp.float32,
                            minval=-1.0 / jnp.sqrt(hidden_size),
                            maxval=1.0 / jnp.sqrt(hidden_size))

    params, out_features = prepare_params(w1, b1, w2, b2)

    # Case 1: small batch, block_m auto-picked (= batch rounded up to 8).
    x = jax.random.normal(kx, (8, input_size), dtype=jnp.float32)
    out = jax.block_until_ready(mlp_forward(x, *params, out_features=out_features))
    ref = _reference(x, *params, out_features=out_features)
    assert out.shape == (8, output_size), out.shape
    assert jnp.allclose(out, ref, atol=2e-3, rtol=2e-3), \
        float(jnp.max(jnp.abs(out - ref)))

    # Case 2: ragged batch (not a multiple of block_m) + multi-step grid.
    x2 = jax.random.normal(kx2, (13, input_size), dtype=jnp.float32)
    out2 = jax.block_until_ready(
        mlp_forward(x2, *params, out_features=out_features, block_m=8))
    ref2 = _reference(x2, *params, out_features=out_features)
    assert out2.shape == (13, output_size), out2.shape
    assert jnp.allclose(out2, ref2, atol=2e-3, rtol=2e-3), \
        float(jnp.max(jnp.abs(out2 - ref2)))

    print("KERNEL_OK")
</pallas_src>

<mosaic_0001>
module attributes {stable_mosaic.version = 11 : i64} {
  func.func @_mlp_kernel(%arg0: i32, %arg1: memref<8x3072xf32, #tpu.memory_space<vmem>>, %arg2: memref<256x3072xbf16, #tpu.memory_space<vmem>>, %arg3: memref<1x256xf32, #tpu.memory_space<vmem>>, %arg4: memref<128x256xbf16, #tpu.memory_space<vmem>>, %arg5: memref<1x128xf32, #tpu.memory_space<vmem>>, %arg6: memref<8x128xf32, #tpu.memory_space<vmem>>) attributes {dimension_semantics = [#tpu.dimension_semantics<parallel>], iteration_bounds = array<i64: 1>, scalar_prefetch = 0 : i64, scratch_operands = 0 : i64, tpu.core_type = #tpu.core_type<tc>, window_params = [{transform_indices = @transform_0, window_bounds = array<i64: 8, 3072>}, {pipeline_mode = #tpu.pipeline_mode<synchronous>, transform_indices = @transform_1, window_bounds = array<i64: 256, 3072>}, {pipeline_mode = #tpu.pipeline_mode<synchronous>, transform_indices = @transform_2, window_bounds = array<i64: 1, 256>}, {pipeline_mode = #tpu.pipeline_mode<synchronous>, transform_indices = @transform_3, window_bounds = array<i64: 128, 256>}, {pipeline_mode = #tpu.pipeline_mode<synchronous>, transform_indices = @transform_4, window_bounds = array<i64: 1, 128>}, {transform_indices = @transform_5, window_bounds = array<i64: 8, 128>}]} {
    %c0 = arith.constant 0 : index
    %c0_0 = arith.constant 0 : index
    %0 = vector.load %arg1[%c0, %c0_0] : memref<8x3072xf32, #tpu.memory_space<vmem>>, vector<8x3072xf32>
    %1 = arith.truncf %0 : vector<8x3072xf32> to vector<8x3072xbf16>
    %c0_1 = arith.constant 0 : index
    %c0_2 = arith.constant 0 : index
    %2 = vector.load %arg2[%c0_1, %c0_2] : memref<256x3072xbf16, #tpu.memory_space<vmem>>, vector<256x3072xbf16>
    %cst = arith.constant dense<0.000000e+00> : vector<8x256xf32>
    %3 = tpu.matmul %1, %2, %cst {dimension_numbers = #tpu.dot_dimension_numbers<[1], [1], [0], [0], [0, 0, 1, 0], [], []>} : vector<8x3072xbf16>, vector<256x3072xbf16>, vector<8x256xf32> -> vector<8x256xf32>
    %c0_3 = arith.constant 0 : index
    %c0_4 = arith.constant 0 : index
    %4 = vector.load %arg3[%c0_3, %c0_4] : memref<1x256xf32, #tpu.memory_space<vmem>>, vector<1x256xf32>
    %5 = vector.broadcast %4 : vector<1x256xf32> to vector<8x256xf32>
    %6 = arith.addf %3, %5 : vector<8x256xf32>
    %cst_5 = arith.constant 0.000000e+00 : f32
    %7 = vector.broadcast %cst_5 : f32 to vector<8x256xf32>
    %8 = arith.maximumf %6, %7 : vector<8x256xf32>
    %9 = arith.truncf %8 : vector<8x256xf32> to vector<8x256xbf16>
    %c0_6 = arith.constant 0 : index
    %c0_7 = arith.constant 0 : index
    %10 = vector.load %arg4[%c0_6, %c0_7] : memref<128x256xbf16, #tpu.memory_space<vmem>>, vector<128x256xbf16>
    %cst_8 = arith.constant dense<0.000000e+00> : vector<8x128xf32>
    %11 = tpu.matmul %9, %10, %cst_8 {dimension_numbers = #tpu.dot_dimension_numbers<[1], [1], [0], [0], [0, 0, 1, 0], [], []>} : vector<8x256xbf16>, vector<128x256xbf16>, vector<8x128xf32> -> vector<8x128xf32>
    %c0_9 = arith.constant 0 : index
    %c0_10 = arith.constant 0 : index
    %12 = vector.load %arg5[%c0_9, %c0_10] : memref<1x128xf32, #tpu.memory_space<vmem>>, vector<1x128xf32>
    %13 = vector.broadcast %12 : vector<1x128xf32> to vector<8x128xf32>
    %14 = arith.addf %11, %13 : vector<8x128xf32>
    %c0_11 = arith.constant 0 : index
    %c0_12 = arith.constant 0 : index
    %15 = vector.load %arg6[%c0_11, %c0_12] : memref<8x128xf32, #tpu.memory_space<vmem>>, vector<8x128xf32>
    tpu.vector_store %arg6[%c0_11, %c0_12], %14 {strides = array<i32>} : memref<8x128xf32, #tpu.memory_space<vmem>>, vector<8x128xf32>,
    return
  }
  func.func @transform_0(%arg0: i32) -> (i32, i32) {
    %c0_i32 = arith.constant 0 : i32
    %c0_i32_0 = arith.constant 0 : i32
    return %arg0, %c0_i32 : i32, i32
  }
  func.func @transform_1(%arg0: i32) -> (i32, i32) {
    %c0_i32 = arith.constant 0 : i32
    %c0_i32_0 = arith.constant 0 : i32
    %c0_i32_1 = arith.constant 0 : i32
    return %c0_i32, %c0_i32_0 : i32, i32
  }
  func.func @transform_2(%arg0: i32) -> (i32, i32) {
    %c0_i32 = arith.constant 0 : i32
    %c0_i32_0 = arith.constant 0 : i32
    %c0_i32_1 = arith.constant 0 : i32
    return %c0_i32, %c0_i32_0 : i32, i32
  }
  func.func @transform_3(%arg0: i32) -> (i32, i32) {
    %c0_i32 = arith.constant 0 : i32
    %c0_i32_0 = arith.constant 0 : i32
    %c0_i32_1 = arith.constant 0 : i32
    return %c0_i32, %c0_i32_0 : i32, i32
  }
  func.func @transform_4(%arg0: i32) -> (i32, i32) {
    %c0_i32 = arith.constant 0 : i32
    %c0_i32_0 = arith.constant 0 : i32
    %c0_i32_1 = arith.constant 0 : i32
    return %c0_i32, %c0_i32_0 : i32, i32
  }
  func.func @transform_5(%arg0: i32) -> (i32, i32) {
    %c0_i32 = arith.constant 0 : i32
    %c0_i32_0 = arith.constant 0 : i32
    return %arg0, %c0_i32 : i32, i32
  }
}

</mosaic_0001>

<llo_original>
// kernel: mlp_forward.1
$region0: #{mlp_forward.1}
  #allocation0 [shape = 'u32[]', space=smem, size = 0x4, offset = 0x4, fixed_abs, tag = 'smem constant byte address 0x4 - core index']
  #allocation1 [shape = 'u32[144,128]{1,0:T(1,128)}', space=vmem, size = 0x12000, scoped, tag = 'internal scratch']
  %s0 = inlined_call_operand.hbm [shape: f32[8,3072], index: 0, kind: input, shape index: {}]
  %s1 = inlined_call_operand.hbm [shape: bf16[256,3072], index: 1, kind: input, shape index: {}]
  %s2 = inlined_call_operand.hbm [shape: f32[1,256], index: 2, kind: input, shape index: {}]
  %s3 = inlined_call_operand.hbm [shape: bf16[128,256], index: 3, kind: input, shape index: {}]
  %s4 = inlined_call_operand.hbm [shape: f32[1,128], index: 4, kind: input, shape index: {}]
  %s5 = inlined_call_operand.hbm [shape: f32[8,128], index: 5, kind: output, shape index: {}]
  %s6 = sld [smem:[#allocation0]]
  $region50: #{mlp_forward.1} parent=0
    _
  %s8 = ssub.s32 1, %s6
  %s9 = scalar_select 0, %s8, %s6
  $region1: #{mlp_forward.1} parent=0
    #allocation2 [shape = 'u8[98304]{0}', space=vmem, size = 0x18000, scoped, tag = 'input window, operand 0, single buffered']
    #allocation3 [shape = 's32[1]{0}', space=sflag, size = 0x4, scoped, tag = 'scoped memory for mlp_forward.1']
    #allocation4 [shape = 's32[1]{0}', space=sflag, size = 0x4, scoped, tag = 'scoped memory for mlp_forward.1']
    #allocation5 [shape = 'u8[1572864]{0}', space=vmem, size = 0x180000, scoped, tag = 'input window, operand 1, single buffered']
    #allocation6 [shape = 's32[1]{0}', space=sflag, size = 0x4, scoped, tag = 'scoped memory for mlp_forward.1']
    #allocation7 [shape = 'u8[1024]{0}', space=vmem, size = 0x400, scoped, tag = 'input window, operand 2, single buffered']
    #allocation8 [shape = 'u8[65536]{0}', space=vmem, size = 0x10000, scoped, tag = 'input window, operand 3, single buffered']
    #allocation9 [shape = 's32[1]{0}', space=sflag, size = 0x4, scoped, tag = 'scoped memory for mlp_forward.1']
    #allocation10 [shape = 'u8[512]{0}', space=vmem, size = 0x400, scoped, tag = 'input window, operand 4, single buffered']
    #allocation11 [shape = 'u8[4096]{0}', space=vmem, size = 0x1000, scoped, tag = 'output window, operand 0, single buffered']
    %10 = vsyncpa [#allocation3], 0
    %11 = vsyncpa [#allocation6], 0
    %12 = vsyncpa [#allocation9], 0
    %13 = vsyncpa [#allocation4], 0
    // Predicated region
    $region2: #{mlp_forward.1} parent=1 // pred_check
      _
    $region3: #{mlp_forward.1} parent=1 // pred_check_branch
      %15 = sbr.rel (0) target = $region5
    $region4: #{mlp_forward.1} parent=1 // pred_region
      %s17 = ssub.s32 3072, 3072
      %18 = vsyncadd [#allocation3], %s17
      %s20 = sshll.u32 [#allocation2], 4
      %s21 = int_to_ptr.vmem [resolvable:$true] %s20
      %23 = dma.hbm_to_vmem [thread:$0]  %s0, 3072, %s21, [#allocation3]
    $region5: #{mlp_forward.1} parent=1 // pred_fallthru
      _
    // Predicated region
    $region6: #{mlp_forward.1} parent=1 // pred_check
      _
    $region7: #{mlp_forward.1} parent=1 // pred_check_branch
      %25 = sbr.rel (0) target = $region9
    $region8: #{mlp_forward.1} parent=1 // pred_region
      %s27 = ssub.s32 49152, 49152
      %28 = vsyncadd [#allocation6], %s27
      %s29 = sshll.u32 [#allocation5], 4
      %s30 = int_to_ptr.vmem [resolvable:$true] %s29
      %35 = dma.hbm_to_vmem [thread:$0]  %s1, 49152, %s30, [#allocation6], 1536, 1536, 96
    $region9: #{mlp_forward.1} parent=1 // pred_fallthru
      _
    // Predicated region
    $region10: #{mlp_forward.1} parent=1 // pred_check
      _
    $region11: #{mlp_forward.1} parent=1 // pred_check_branch
      %37 = sbr.rel (0) target = $region13
    $region12: #{mlp_forward.1} parent=1 // pred_region
      %s39 = ssub.s32 32, 32
      %40 = vsyncadd [#allocation6], %s39
      %s42 = sshll.u32 [#allocation7], 4
      %s43 = int_to_ptr.vmem [resolvable:$true] %s42
      %45 = dma.hbm_to_vmem [thread:$0]  %s2, 32, %s43, [#allocation6]
    $region13: #{mlp_forward.1} parent=1 // pred_fallthru
      _
    // Predicated region
    $region14: #{mlp_forward.1} parent=1 // pred_check
      _
    $region15: #{mlp_forward.1} parent=1 // pred_check_branch
      %47 = sbr.rel (0) target = $region17
    $region16: #{mlp_forward.1} parent=1 // pred_region
      %s49 = ssub.s32 2048, 2048
      %50 = vsyncadd [#allocation9], %s49
      %s51 = sshll.u32 [#allocation8], 4
      %s52 = int_to_ptr.vmem [resolvable:$true] %s51
      %57 = dma.hbm_to_vmem [thread:$0]  %s3, 2048, %s52, [#allocation9], 128, 128, 8
    $region17: #{mlp_forward.1} parent=1 // pred_fallthru
      _
    // Predicated region
    $region18: #{mlp_forward.1} parent=1 // pred_check
      _
    $region19: #{mlp_forward.1} parent=1 // pred_check_branch
      %59 = sbr.rel (0) target = $region21
    $region20: #{mlp_forward.1} parent=1 // pred_region
      %s61 = ssub.s32 16, 16
      %62 = vsyncadd [#allocation9], %s61
      %s64 = sshll.u32 [#allocation10], 4
      %s65 = int_to_ptr.vmem [resolvable:$true] %s64
      %67 = dma.hbm_to_vmem [thread:$0]  %s4, 16, %s65, [#allocation9]
    $region21: #{mlp_forward.1} parent=1 // pred_fallthru
      _
    // Predicated region
    $region22: #{mlp_forward.1} parent=1 // pred_check
      _
    $region23: #{mlp_forward.1} parent=1 // pred_check_branch
      %69 = sbr.rel (0) target = $region25
    $region24: #{mlp_forward.1} parent=1 // pred_region
      %70 = dma.done [#allocation3], 3072
    $region25: #{mlp_forward.1} parent=1 // pred_fallthru
      _
    // Predicated region
    $region26: #{mlp_forward.1} parent=1 // pred_check
      _
    $region27: #{mlp_forward.1} parent=1 // pred_check_branch
      %72 = sbr.rel (0) target = $region29
    $region28: #{mlp_forward.1} parent=1 // pred_region
      %73 = dma.done [#allocation6], 49152
    $region29: #{mlp_forward.1} parent=1 // pred_fallthru
      _
    // Predicated region
    $region30: #{mlp_forward.1} parent=1 // pred_check
      _
    $region31: #{mlp_forward.1} parent=1 // pred_check_branch
      %75 = sbr.rel (0) target = $region33
    $region32: #{mlp_forward.1} parent=1 // pred_region
      %76 = dma.done [#allocation6], 32
    $region33: #{mlp_forward.1} parent=1 // pred_fallthru
      _
    // Predicated region
    $region34: #{mlp_forward.1} parent=1 // pred_check
      _
    $region35: #{mlp_forward.1} parent=1 // pred_check_branch
      %78 = sbr.rel (0) target = $region37
    $region36: #{mlp_forward.1} parent=1 // pred_region
      %79 = dma.done [#allocation9], 2048
    $region37: #{mlp_forward.1} parent=1 // pred_fallthru
      _
    // Predicated region
    $region38: #{mlp_forward.1} parent=1 // pred_check
      _
    $region39: #{mlp_forward.1} parent=1 // pred_check_branch
      %81 = sbr.rel (0) target = $region41
    $region40: #{mlp_forward.1} parent=1 // pred_region
      %82 = dma.done [#allocation9], 16
    $region41: #{mlp_forward.1} parent=1 // pred_fallthru
      _
    %v84 = vld [vmem:[#allocation2] sm:$0xff]
    %v85 = vld [vmem:[#allocation2 + $0x8] sm:$0xff]
    %v86 = vld [vmem:[#allocation2 + $0x10] sm:$0xff]
    %v87 = vld [vmem:[#allocation2 + $0x18] sm:$0xff]
    %v88 = vld [vmem:[#allocation2 + $0x20] sm:$0xff]
    %v89 = vld [vmem:[#allocation2 + $0x28] sm:$0xff]
    %v90 = vld [vmem:[#allocation2 + $0x30] sm:$0xff]
    %v91 = vld [vmem:[#allocation2 + $0x38] sm:$0xff]
    %v92 = vld [vmem:[#allocation2 + $0x40] sm:$0xff]
    %v93 = vld [vmem:[#allocation2 + $0x48] sm:$0xff]
    %v94 = vld [vmem:[#allocation2 + $0x50] sm:$0xff]
    %v95 = vld [vmem:[#allocation2 + $0x58] sm:$0xff]
    %v96 = vld [vmem:[#allocation2 + $0x60] sm:$0xff]
    %v97 = vld [vmem:[#allocation2 + $0x68] sm:$0xff]
    %v98 = vld [vmem:[#allocation2 + $0x70] sm:$0xff]
    %v99 = vld [vmem:[#allocation2 + $0x78] sm:$0xff]
    %v100 = vld [vmem:[#allocation2 + $0x80] sm:$0xff]
    %v101 = vld [vmem:[#allocation2 + $0x88] sm:$0xff]
    %v102 = vld [vmem:[#allocation2 + $0x90] sm:$0xff]
    %v103 = vld [vmem:[#allocation2 + $0x98] sm:$0xff]
    %v104 = vld [vmem:[#allocation2 + $0xa0] sm:$0xff]
    %v105 = vld [vmem:[#allocation2 + $0xa8] sm:$0xff]
    %v106 = vld [vmem:[#allocation2 + $0xb0] sm:$0xff]
    %v107 = vld [vmem:[#allocation2 + $0xb8] sm:$0xff]
    %v108 = vpack.c.bf16 %v84, %v84
    %v109 = vpack.c.bf16 %v85, %v85
    %v110 = vpack.c.bf16 %v86, %v86
    %v111 = vpack.c.bf16 %v87, %v87
    %v112 = vpack.c.bf16 %v88, %v88
    %v113 = vpack.c.bf16 %v89, %v89
    %v114 = vpack.c.bf16 %v90, %v90
    %v115 = vpack.c.bf16 %v91, %v91
    %v116 = vpack.c.bf16 %v92, %v92
    %v117 = vpack.c.bf16 %v93, %v93
    %v118 = vpack.c.bf16 %v94, %v94
    %v119 = vpack.c.bf16 %v95, %v95
    %v120 = vpack.c.bf16 %v96, %v96
    %v121 = vpack.c.bf16 %v97, %v97
    %v122 = vpack.c.bf16 %v98, %v98
    %v123 = vpack.c.bf16 %v99, %v99
    %v124 = vpack.c.bf16 %v100, %v100
    %v125 = vpack.c.bf16 %v101, %v101
    %v126 = vpack.c.bf16 %v102, %v102
    %v127 = vpack.c.bf16 %v103, %v103
    %v128 = vpack.c.bf16 %v104, %v104
    %v129 = vpack.c.bf16 %v105, %v105
    %v130 = vpack.c.bf16 %v106, %v106
    %v131 = vpack.c.bf16 %v107, %v107
    %v132 = vld [vmem:[#allocation5] sm:$0xff]
    %v133 = vld [vmem:[#allocation5 + $0x8] sm:$0xff]
    %v134 = vld [vmem:[#allocation5 + $0x10] sm:$0xff]
    %v135 = vld [vmem:[#allocation5 + $0x18] sm:$0xff]
    %v136 = vld [vmem:[#allocation5 + $0x20] sm:$0xff]
    %v137 = vld [vmem:[#allocation5 + $0x28] sm:$0xff]
    %v138 = vld [vmem:[#allocation5 + $0x30] sm:$0xff]
    %v139 = vld [vmem:[#allocation5 + $0x38] sm:$0xff]
    %v140 = vld [vmem:[#allocation5 + $0x40] sm:$0xff]
    %v141 = vld [vmem:[#allocation5 + $0x48] sm:$0xff]
    %v142 = vld [vmem:[#allocation5 + $0x50] sm:$0xff]
    %v143 = vld [vmem:[#allocation5 + $0x58] sm:$0xff]
    %v144 = vld [vmem:[#allocation5 + $0x60] sm:$0xff]
    %v145 = vld [vmem:[#allocation5 + $0x68] sm:$0xff]
    %v146 = vld [vmem:[#allocation5 + $0x70] sm:$0xff]
    %v147 = vld [vmem:[#allocation5 + $0x78] sm:$0xff]
    %v148 = vld [vmem:[#allocation5 + $0x80] sm:$0xff]
    %v149 = vld [vmem:[#allocation5 + $0x88] sm:$0xff]
    %v150 = vld [vmem:[#allocation5 + $0x90] sm:$0xff]
    %v151 = vld [vmem:[#allocation5 + $0x98] sm:$0xff]
    %v152 = vld [vmem:[#allocation5 + $0xa0] sm:$0xff]
    %v153 = vld [vmem:[#allocation5 + $0xa8] sm:$0xff]
    %v154 = vld [vmem:[#allocation5 + $0xb0] sm:$0xff]
    %v155 = vld [vmem:[#allocation5 + $0xb8] sm:$0xff]
    %v156 = vld [vmem:[#allocation5 + $0xc0] sm:$0xff]
    %v157 = vld [vmem:[#allocation5 + $0xc8] sm:$0xff]
    %v158 = vld [vmem:[#allocation5 + $0xd0] sm:$0xff]
    %v159 = vld [vmem:[#allocation5 + $0xd8] sm:$0xff]
    %v160 = vld [vmem:[#allocation5 + $0xe0] sm:$0xff]
    %v161 = vld [vmem:[#allocation5 + $0xe8] sm:$0xff]
    %v162 = vld [vmem:[#allocation5 + $0xf0] sm:$0xff]
    %v163 = vld [vmem:[#allocation5 + $0xf8] sm:$0xff]
    %v164 = vld [vmem:[#allocation5 + $0x100] sm:$0xff]
    %v165 = vld [vmem:[#allocation5 + $0x108] sm:$0xff]
    %v166 = vld [vmem:[#allocation5 + $0x110] sm:$0xff]
    %v167 = vld [vmem:[#allocation5 + $0x118] sm:$0xff]
    %v168 = vld [vmem:[#allocation5 + $0x120] sm:$0xff]
    %v169 = vld [vmem:[#allocation5 + $0x128] sm:$0xff]
    %v170 = vld [vmem:[#allocation5 + $0x130] sm:$0xff]
    %v171 = vld [vmem:[#allocation5 + $0x138] sm:$0xff]
    %v172 = vld [vmem:[#allocation5 + $0x140] sm:$0xff]
    %v173 = vld [vmem:[#allocation5 + $0x148] sm:$0xff]
    %v174 = vld [vmem:[#allocation5 + $0x150] sm:$0xff]
    %v175 = vld [vmem:[#allocation5 + $0x158] sm:$0xff]
    %v176 = vld [vmem:[#allocation5 + $0x160] sm:$0xff]
    %v177 = vld [vmem:[#allocation5 + $0x168] sm:$0xff]
    %v178 = vld [vmem:[#allocation5 + $0x170] sm:$0xff]
    %v179 = vld [vmem:[#allocation5 + $0x178] sm:$0xff]
    %v180 = vld [vmem:[#allocation5 + $0x180] sm:$0xff]
    %v181 = vld [vmem:[#allocation5 + $0x188] sm:$0xff]
    %v182 = vld [vmem:[#allocation5 + $0x190] sm:$0xff]
    %v183 = vld [vmem:[#allocation5 + $0x198] sm:$0xff]
    %v184 = vld [vmem:[#allocation5 + $0x1a0] sm:$0xff]
    %v185 = vld [vmem:[#allocation5 + $0x1a8] sm:$0xff]
    %v186 = vld [vmem:[#allocation5 + $0x1b0] sm:$0xff]
    %v187 = vld [vmem:[#allocation5 + $0x1b8] sm:$0xff]
    %v188 = vld [vmem:[#allocation5 + $0x1c0] sm:$0xff]
    %v189 = vld [vmem:[#allocation5 + $0x1c8] sm:$0xff]
    %v190 = vld [vmem:[#allocation5 + $0x1d0] sm:$0xff]
    %v191 = vld [vmem:[#allocation5 + $0x1d8] sm:$0xff]
    %v192 = vld [vmem:[#allocation5 + $0x1e0] sm:$0xff]
    %v193 = vld [vmem:[#allocation5 + $0x1e8] sm:$0xff]
    %v194 = vld [vmem:[#allocation5 + $0x1f0] sm:$0xff]
    %v195 = vld [vmem:[#allocation5 + $0x1f8] sm:$0xff]
    %v196 = vld [vmem:[#allocation5 + $0x200] sm:$0xff]
    %v197 = vld [vmem:[#allocation5 + $0x208] sm:$0xff]
    %v198 = vld [vmem:[#allocation5 + $0x210] sm:$0xff]
    %v199 = vld [vmem:[#allocation5 + $0x218] sm:$0xff]
    %v200 = vld [vmem:[#allocation5 + $0x220] sm:$0xff]
    %v201 = vld [vmem:[#allocation5 + $0x228] sm:$0xff]
    %v202 = vld [vmem:[#allocation5 + $0x230] sm:$0xff]
    %v203 = vld [vmem:[#allocation5 + $0x238] sm:$0xff]
    %v204 = vld [vmem:[#allocation5 + $0x240] sm:$0xff]
    %v205 = vld [vmem:[#allocation5 + $0x248] sm:$0xff]
    %v206 = vld [vmem:[#allocation5 + $0x250] sm:$0xff]
    %v207 = vld [vmem:[#allocation5 + $0x258] sm:$0xff]
    %v208 = vld [vmem:[#allocation5 + $0x260] sm:$0xff]
    %v209 = vld [vmem:[#allocation5 + $0x268] sm:$0xff]
    %v210 = vld [vmem:[#allocation5 + $0x270] sm:$0xff]
    %v211 = vld [vmem:[#allocation5 + $0x278] sm:$0xff]
    %v212 = vld [vmem:[#allocation5 + $0x280] sm:$0xff]
    %v213 = vld [vmem:[#allocation5 + $0x288] sm:$0xff]
    %v214 = vld [vmem:[#allocation5 + $0x290] sm:$0xff]
    %v215 = vld [vmem:[#allocation5 + $0x298] sm:$0xff]
    %v216 = vld [vmem:[#allocation5 + $0x2a0] sm:$0xff]
    %v217 = vld [vmem:[#allocation5 + $0x2a8] sm:$0xff]
    %v218 = vld [vmem:[#allocation5 + $0x2b0] sm:$0xff]
    %v219 = vld [vmem:[#allocation5 + $0x2b8] sm:$0xff]
    %v220 = vld [vmem:[#allocation5 + $0x2c0] sm:$0xff]
    %v221 = vld [vmem:[#allocation5 + $0x2c8] sm:$0xff]
    %v222 = vld [vmem:[#allocation5 + $0x2d0] sm:$0xff]
    %v223 = vld [vmem:[#allocation5 + $0x2d8] sm:$0xff]
    %v224 = vld [vmem:[#allocation5 + $0x2e0] sm:$0xff]
    %v225 = vld [vmem:[#allocation5 + $0x2e8] sm:$0xff]
    %v226 = vld [vmem:[#allocation5 + $0x2f0] sm:$0xff]
    %v227 = vld [vmem:[#allocation5 + $0x2f8] sm:$0xff]
    %v228 = vld [vmem:[#allocation5 + $0x300] sm:$0xff]
    %v229 = vld [vmem:[#allocation5 + $0x308] sm:$0xff]
    %v230 = vld [vmem:[#allocation5 + $0x310] sm:$0xff]
    %v231 = vld [vmem:[#allocation5 + $0x318] sm:$0xff]
    %v232 = vld [vmem:[#allocation5 + $0x320] sm:$0xff]
    %v233 = vld [vmem:[#allocation5 + $0x328] sm:$0xff]
    %v234 = vld [vmem:[#allocation5 + $0x330] sm:$0xff]
    %v235 = vld [vmem:[#allocation5 + $0x338] sm:$0xff]
    %v236 = vld [vmem:[#allocation5 + $0x340] sm:$0xff]
    %v237 = vld [vmem:[#allocation5 + $0x348] sm:$0xff]
    %v238 = vld [vmem:[#allocation5 + $0x350] sm:$0xff]
    %v239 = vld [vmem:[#allocation5 + $0x358] sm:$0xff]
    %v240 = vld [vmem:[#allocation5 + $0x360] sm:$0xff]
    %v241 = vld [vmem:[#allocation5 + $0x368] sm:$0xff]
    %v242 = vld [vmem:[#allocation5 + $0x370] sm:$0xff]
    %v243 = vld [vmem:[#allocation5 + $0x378] sm:$0xff]
    %v244 = vld [vmem:[#allocation5 + $0x380] sm:$0xff]
    %v245 = vld [vmem:[#allocation5 + $0x388] sm:$0xff]
    %v246 = vld [vmem:[#allocation5 + $0x390] sm:$0xff]
    %v247 = vld [vmem:[#allocation5 + $0x398] sm:$0xff]
    %v248 = vld [vmem:[#allocation5 + $0x3a0] sm:$0xff]
    %v249 = vld [vmem:[#allocation5 + $0x3a8] sm:$0xff]
    %v250 = vld [vmem:[#allocation5 + $0x3b0] sm:$0xff]
    %v251 = vld [vmem:[#allocation5 + $0x3b8] sm:$0xff]
    %v252 = vld [vmem:[#allocation5 + $0x3c0] sm:$0xff]
    %v253 = vld [vmem:[#allocation5 + $0x3c8] sm:$0xff]
    %v254 = vld [vmem:[#allocation5 + $0x3d0] sm:$0xff]
    %v255 = vld [vmem:[#allocation5 + $0x3d8] sm:$0xff]
    %v256 = vld [vmem:[#allocation5 + $0x3e0] sm:$0xff]
    %v257 = vld [vmem:[#allocation5 + $0x3e8] sm:$0xff]
    %v258 = vld [vmem:[#allocation5 + $0x3f0] sm:$0xff]
    %v259 = vld [vmem:[#allocation5 + $0x3f8] sm:$0xff]
    %v260 = vld [vmem:[#allocation5 + $0x400] sm:$0xff]
    %v261 = vld [vmem:[#allocation5 + $0x408] sm:$0xff]
    %v262 = vld [vmem:[#allocation5 + $0x410] sm:$0xff]
    %v263 = vld [vmem:[#allocation5 + $0x418] sm:$0xff]
    %v264 = vld [vmem:[#allocation5 + $0x420] sm:$0xff]
    %v265 = vld [vmem:[#allocation5 + $0x428] sm:$0xff]
    %v266 = vld [vmem:[#allocation5 + $0x430] sm:$0xff]
    %v267 = vld [vmem:[#allocation5 + $0x438] sm:$0xff]
    %v268 = vld [vmem:[#allocation5 + $0x440] sm:$0xff]
    %v269 = vld [vmem:[#allocation5 + $0x448] sm:$0xff]
    %v270 = vld [vmem:[#allocation5 + $0x450] sm:$0xff]
    %v271 = vld [vmem:[#allocation5 + $0x458] sm:$0xff]
    %v272 = vld [vmem:[#allocation5 + $0x460] sm:$0xff]
    %v273 = vld [vmem:[#allocation5 + $0x468] sm:$0xff]
    %v274 = vld [vmem:[#allocation5 + $0x470] sm:$0xff]
    %v275 = vld [vmem:[#allocation5 + $0x478] sm:$0xff]
    %v276 = vld [vmem:[#allocation5 + $0x480] sm:$0xff]
    %v277 = vld [vmem:[#allocation5 + $0x488] sm:$0xff]
    %v278 = vld [vmem:[#allocation5 + $0x490] sm:$0xff]
    %v279 = vld [vmem:[#allocation5 + $0x498] sm:$0xff]
    %v280 = vld [vmem:[#allocation5 + $0x4a0] sm:$0xff]
    %v281 = vld [vmem:[#allocation5 + $0x4a8] sm:$0xff]
    %v282 = vld [vmem:[#allocation5 + $0x4b0] sm:$0xff]
    %v283 = vld [vmem:[#allocation5 + $0x4b8] sm:$0xff]
    %v284 = vld [vmem:[#allocation5 + $0x4c0] sm:$0xff]
    %v285 = vld [vmem:[#allocation5 + $0x4c8] sm:$0xff]
    %v286 = vld [vmem:[#allocation5 + $0x4d0] sm:$0xff]
    %v287 = vld [vmem:[#allocation5 + $0x4d8] sm:$0xff]
    %v288 = vld [vmem:[#allocation5 + $0x4e0] sm:$0xff]
    %v289 = vld [vmem:[#allocation5 + $0x4e8] sm:$0xff]
    %v290 = vld [vmem:[#allocation5 + $0x4f0] sm:$0xff]
    %v291 = vld [vmem:[#allocation5 + $0x4f8] sm:$0xff]
    %v292 = vld [vmem:[#allocation5 + $0x500] sm:$0xff]
    %v293 = vld [vmem:[#allocation5 + $0x508] sm:$0xff]
    %v294 = vld [vmem:[#allocation5 + $0x510] sm:$0xff]
    %v295 = vld [vmem:[#allocation5 + $0x518] sm:$0xff]
    %v296 = vld [vmem:[#allocation5 + $0x520] sm:$0xff]
    %v297 = vld [vmem:[#allocation5 + $0x528] sm:$0xff]
    %v298 = vld [vmem:[#allocation5 + $0x530] sm:$0xff]
    %v299 = vld [vmem:[#allocation5 + $0x538] sm:$0xff]
    %v300 = vld [vmem:[#allocation5 + $0x540] sm:$0xff]
    %v301 = vld [vmem:[#allocation5 + $0x548] sm:$0xff]
    %v302 = vld [vmem:[#allocation5 + $0x550] sm:$0xff]
    %v303 = vld [vmem:[#allocation5 + $0x558] sm:$0xff]
    %v304 = vld [vmem:[#allocation5 + $0x560] sm:$0xff]
    %v305 = vld [vmem:[#allocation5 + $0x568] sm:$0xff]
    %v306 = vld [vmem:[#allocation5 + $0x570] sm:$0xff]
    %v307 = vld [vmem:[#allocation5 + $0x578] sm:$0xff]
    %v308 = vld [vmem:[#allocation5 + $0x580] sm:$0xff]
    %v309 = vld [vmem:[#allocation5 + $0x588] sm:$0xff]
    %v310 = vld [vmem:[#allocation5 + $0x590] sm:$0xff]
    %v311 = vld [vmem:[#allocation5 + $0x598] sm:$0xff]
    %v312 = vld [vmem:[#allocation5 + $0x5a0] sm:$0xff]
    %v313 = vld [vmem:[#allocation5 + $0x5a8] sm:$0xff]
    %v314 = vld [vmem:[#allocation5 + $0x5b0] sm:$0xff]
    %v315 = vld [vmem:[#allocation5 + $0x5b8] sm:$0xff]
    %v316 = vld [vmem:[#allocation5 + $0x5c0] sm:$0xff]
    %v317 = vld [vmem:[#allocation5 + $0x5c8] sm:$0xff]
    %v318 = vld [vmem:[#allocation5 + $0x5d0] sm:$0xff]
    %v319 = vld [vmem:[#allocation5 + $0x5d8] sm:$0xff]
    %v320 = vld [vmem:[#allocation5 + $0x5e0] sm:$0xff]
    %v321 = vld [vmem:[#allocation5 + $0x5e8] sm:$0xff]
    %v322 = vld [vmem:[#allocation5 + $0x5f0] sm:$0xff]
    %v323 = vld [vmem:[#allocation5 + $0x5f8] sm:$0xff]
    %v324 = vld [vmem:[#allocation5 + $0x600] sm:$0xff]
    %v325 = vld [vmem:[#allocation5 + $0x608] sm:$0xff]
    %v326 = vld [vmem:[#allocation5 + $0x610] sm:$0xff]
    %v327 = vld [vmem:[#allocation5 + $0x618] sm:$0xff]
    %v328 = vld [vmem:[#allocation5 + $0x620] sm:$0xff]
    %v329 = vld [vmem:[#allocation5 + $0x628] sm:$0xff]
    %v330 = vld [vmem:[#allocation5 + $0x630] sm:$0xff]
    %v331 = vld [vmem:[#allocation5 + $0x638] sm:$0xff]
    %v332 = vld [vmem:[#allocation5 + $0x640] sm:$0xff]
    %v333 = vld [vmem:[#allocation5 + $0x648] sm:$0xff]
    %v334 = vld [vmem:[#allocation5 + $0x650] sm:$0xff]
    %v335 = vld [vmem:[#allocation5 + $0x658] sm:$0xff]
    %v336 = vld [vmem:[#allocation5 + $0x660] sm:$0xff]
    %v337 = vld [vmem:[#allocation5 + $0x668] sm:$0xff]
    %v338 = vld [vmem:[#allocation5 + $0x670] sm:$0xff]
    %v339 = vld [vmem:[#allocation5 + $0x678] sm:$0xff]
    %v340 = vld [vmem:[#allocation5 + $0x680] sm:$0xff]
    %v341 = vld [vmem:[#allocation5 + $0x688] sm:$0xff]
    %v342 = vld [vmem:[#allocation5 + $0x690] sm:$0xff]
    %v343 = vld [vmem:[#allocation5 + $0x698] sm:$0xff]
    %v344 = vld [vmem:[#allocation5 + $0x6a0] sm:$0xff]
    %v345 = vld [vmem:[#allocation5 + $0x6a8] sm:$0xff]
    %v346 = vld [vmem:[#allocation5 + $0x6b0] sm:$0xff]
    %v347 = vld [vmem:[#allocation5 + $0x6b8] sm:$0xff]
    %v348 = vld [vmem:[#allocation5 + $0x6c0] sm:$0xff]
    %v349 = vld [vmem:[#allocation5 + $0x6c8] sm:$0xff]
    %v350 = vld [vmem:[#allocation5 + $0x6d0] sm:$0xff]
    %v351 = vld [vmem:[#allocation5 + $0x6d8] sm:$0xff]
    %v352 = vld [vmem:[#allocation5 + $0x6e0] sm:$0xff]
    %v353 = vld [vmem:[#allocation5 + $0x6e8] sm:$0xff]
    %v354 = vld [vmem:[#allocation5 + $0x6f0] sm:$0xff]
    %v355 = vld [vmem:[#allocation5 + $0x6f8] sm:$0xff]
    %v356 = vld [vmem:[#allocation5 + $0x700] sm:$0xff]
    %v357 = vld [vmem:[#allocation5 + $0x708] sm:$0xff]
    %v358 = vld [vmem:[#allocation5 + $0x710] sm:$0xff]
    %v359 = vld [vmem:[#allocation5 + $0x718] sm:$0xff]
    %v360 = vld [vmem:[#allocation5 + $0x720] sm:$0xff]
    %v361 = vld [vmem:[#allocation5 + $0x728] sm:$0xff]
    %v362 = vld [vmem:[#allocation5 + $0x730] sm:$0xff]
    %v363 = vld [vmem:[#allocation5 + $0x738] sm:$0xff]
    %v364 = vld [vmem:[#allocation5 + $0x740] sm:$0xff]
    %v365 = vld [vmem:[#allocation5 + $0x748] sm:$0xff]
    %v366 = vld [vmem:[#allocation5 + $0x750] sm:$0xff]
    %v367 = vld [vmem:[#allocation5 + $0x758] sm:$0xff]
    %v368 = vld [vmem:[#allocation5 + $0x760] sm:$0xff]
    %v369 = vld [vmem:[#allocation5 + $0x768] sm:$0xff]
    %v370 = vld [vmem:[#allocation5 + $0x770] sm:$0xff]
    %v371 = vld [vmem:[#allocation5 + $0x778] sm:$0xff]
    %v372 = vld [vmem:[#allocation5 + $0x780] sm:$0xff]
    %v373 = vld [vmem:[#allocation5 + $0x788] sm:$0xff]
    %v374 = vld [vmem:[#allocation5 + $0x790] sm:$0xff]
    %v375 = vld [vmem:[#allocation5 + $0x798] sm:$0xff]
    %v376 = vld [vmem:[#allocation5 + $0x7a0] sm:$0xff]
    %v377 = vld [vmem:[#allocation5 + $0x7a8] sm:$0xff]
    %v378 = vld [vmem:[#allocation5 + $0x7b0] sm:$0xff]
    %v379 = vld [vmem:[#allocation5 + $0x7b8] sm:$0xff]
    %v380 = vld [vmem:[#allocation5 + $0x7c0] sm:$0xff]
    %v381 = vld [vmem:[#allocation5 + $0x7c8] sm:$0xff]
    %v382 = vld [vmem:[#allocation5 + $0x7d0] sm:$0xff]
    %v383 = vld [vmem:[#allocation5 + $0x7d8] sm:$0xff]
    %v384 = vld [vmem:[#allocation5 + $0x7e0] sm:$0xff]
    %v385 = vld [vmem:[#allocation5 + $0x7e8] sm:$0xff]
    %v386 = vld [vmem:[#allocation5 + $0x7f0] sm:$0xff]
    %v387 = vld [vmem:[#allocation5 + $0x7f8] sm:$0xff]
    %v388 = vld [vmem:[#allocation5 + $0x800] sm:$0xff]
    %v389 = vld [vmem:[#allocation5 + $0x808] sm:$0xff]
    %v390 = vld [vmem:[#allocation5 + $0x810] sm:$0xff]
    %v391 = vld [vmem:[#allocation5 + $0x818] sm:$0xff]
    %v392 = vld [vmem:[#allocation5 + $0x820] sm:$0xff]
    %v393 = vld [vmem:[#allocation5 + $0x828] sm:$0xff]
    %v394 = vld [vmem:[#allocation5 + $0x830] sm:$0xff]
    %v395 = vld [vmem:[#allocation5 + $0x838] sm:$0xff]
    %v396 = vld [vmem:[#allocation5 + $0x840] sm:$0xff]
    %v397 = vld [vmem:[#allocation5 + $0x848] sm:$0xff]
    %v398 = vld [vmem:[#allocation5 + $0x850] sm:$0xff]
    %v399 = vld [vmem:[#allocation5 + $0x858] sm:$0xff]
    %v400 = vld [vmem:[#allocation5 + $0x860] sm:$0xff]
    %v401 = vld [vmem:[#allocation5 + $0x868] sm:$0xff]
    %v402 = vld [vmem:[#allocation5 + $0x870] sm:$0xff]
    %v403 = vld [vmem:[#allocation5 + $0x878] sm:$0xff]
    %v404 = vld [vmem:[#allocation5 + $0x880] sm:$0xff]
    %v405 = vld [vmem:[#allocation5 + $0x888] sm:$0xff]
    %v406 = vld [vmem:[#allocation5 + $0x890] sm:$0xff]
    %v407 = vld [vmem:[#allocation5 + $0x898] sm:$0xff]
    %v408 = vld [vmem:[#allocation5 + $0x8a0] sm:$0xff]
    %v409 = vld [vmem:[#allocation5 + $0x8a8] sm:$0xff]
    %v410 = vld [vmem:[#allocation5 + $0x8b0] sm:$0xff]
    %v411 = vld [vmem:[#allocation5 + $0x8b8] sm:$0xff]
    %v412 = vld [vmem:[#allocation5 + $0x8c0] sm:$0xff]
    %v413 = vld [vmem:[#allocation5 + $0x8c8] sm:$0xff]
    %v414 = vld [vmem:[#allocation5 + $0x8d0] sm:$0xff]
    %v415 = vld [vmem:[#allocation5 + $0x8d8] sm:$0xff]
    %v416 = vld [vmem:[#allocation5 + $0x8e0] sm:$0xff]
    %v417 = vld [vmem:[#allocation5 + $0x8e8] sm:$0xff]
    %v418 = vld [vmem:[#allocation5 + $0x8f0] sm:$0xff]
    %v419 = vld [vmem:[#allocation5 + $0x8f8] sm:$0xff]
    %v420 = vld [vmem:[#allocation5 + $0x900] sm:$0xff]
    %v421 = vld [vmem:[#allocation5 + $0x908] sm:$0xff]
    %v422 = vld [vmem:[#allocation5 + $0x910] sm:$0xff]
    %v423 = vld [vmem:[#allocation5 + $0x918] sm:$0xff]
    %v424 = vld [vmem:[#allocation5 + $0x920] sm:$0xff]
    %v425 = vld [vmem:[#allocation5 + $0x928] sm:$0xff]
    %v426 = vld [vmem:[#allocation5 + $0x930] sm:$0xff]
    %v427 = vld [vmem:[#allocation5 + $0x938] sm:$0xff]
    %v428 = vld [vmem:[#allocation5 + $0x940] sm:$0xff]
    %v429 = vld [vmem:[#allocation5 + $0x948] sm:$0xff]
    %v430 = vld [vmem:[#allocation5 + $0x950] sm:$0xff]
    %v431 = vld [vmem:[#allocation5 + $0x958] sm:$0xff]
    %v432 = vld [vmem:[#allocation5 + $0x960] sm:$0xff]
    %v433 = vld [vmem:[#allocation5 + $0x968] sm:$0xff]
    %v434 = vld [vmem:[#allocation5 + $0x970] sm:$0xff]
    %v435 = vld [vmem:[#allocation5 + $0x978] sm:$0xff]
    %v436 = vld [vmem:[#allocation5 + $0x980] sm:$0xff]
    %v437 = vld [vmem:[#allocation5 + $0x988] sm:$0xff]
    %v438 = vld [vmem:[#allocation5 + $0x990] sm:$0xff]
    %v439 = vld [vmem:[#allocation5 + $0x998] sm:$0xff]
    %v440 = vld [vmem:[#allocation5 + $0x9a0] sm:$0xff]
    %v441 = vld [vmem:[#allocation5 + $0x9a8] sm:$0xff]
    %v442 = vld [vmem:[#allocation5 + $0x9b0] sm:$0xff]
    %v443 = vld [vmem:[#allocation5 + $0x9b8] sm:$0xff]
    %v444 = vld [vmem:[#allocation5 + $0x9c0] sm:$0xff]
    %v445 = vld [vmem:[#allocation5 + $0x9c8] sm:$0xff]
    %v446 = vld [vmem:[#allocation5 + $0x9d0] sm:$0xff]
    %v447 = vld [vmem:[#allocation5 + $0x9d8] sm:$0xff]
    %v448 = vld [vmem:[#allocation5 + $0x9e0] sm:$0xff]
    %v449 = vld [vmem:[#allocation5 + $0x9e8] sm:$0xff]
    %v450 = vld [vmem:[#allocation5 + $0x9f0] sm:$0xff]
    %v451 = vld [vmem:[#allocation5 + $0x9f8] sm:$0xff]
    %v452 = vld [vmem:[#allocation5 + $0xa00] sm:$0xff]
    %v453 = vld [vmem:[#allocation5 + $0xa08] sm:$0xff]
    %v454 = vld [vmem:[#allocation5 + $0xa10] sm:$0xff]
    %v455 = vld [vmem:[#allocation5 + $0xa18] sm:$0xff]
    %v456 = vld [vmem:[#allocation5 + $0xa20] sm:$0xff]
    %v457 = vld [vmem:[#allocation5 + $0xa28] sm:$0xff]
    %v458 = vld [vmem:[#allocation5 + $0xa30] sm:$0xff]
    %v459 = vld [vmem:[#allocation5 + $0xa38] sm:$0xff]
    %v460 = vld [vmem:[#allocation5 + $0xa40] sm:$0xff]
    %v461 = vld [vmem:[#allocation5 + $0xa48] sm:$0xff]
    %v462 = vld [vmem:[#allocation5 + $0xa50] sm:$0xff]
    %v463 = vld [vmem:[#allocation5 + $0xa58] sm:$0xff]
    %v464 = vld [vmem:[#allocation5 + $0xa60] sm:$0xff]
    %v465 = vld [vmem:[#allocation5 + $0xa68] sm:$0xff]
    %v466 = vld [vmem:[#allocation5 + $0xa70] sm:$0xff]
    %v467 = vld [vmem:[#allocation5 + $0xa78] sm:$0xff]
    %v468 = vld [vmem:[#allocation5 + $0xa80] sm:$0xff]
    %v469 = vld [vmem:[#allocation5 + $0xa88] sm:$0xff]
    %v470 = vld [vmem:[#allocation5 + $0xa90] sm:$0xff]
    %v471 = vld [vmem:[#allocation5 + $0xa98] sm:$0xff]
    %v472 = vld [vmem:[#allocation5 + $0xaa0] sm:$0xff]
    %v473 = vld [vmem:[#allocation5 + $0xaa8] sm:$0xff]
    %v474 = vld [vmem:[#allocation5 + $0xab0] sm:$0xff]
    %v475 = vld [vmem:[#allocation5 + $0xab8] sm:$0xff]
    %v476 = vld [vmem:[#allocation5 + $0xac0] sm:$0xff]
    %v477 = vld [vmem:[#allocation5 + $0xac8] sm:$0xff]
    %v478 = vld [vmem:[#allocation5 + $0xad0] sm:$0xff]
    %v479 = vld [vmem:[#allocation5 + $0xad8] sm:$0xff]
    %v480 = vld [vmem:[#allocation5 + $0xae0] sm:$0xff]
    %v481 = vld [vmem:[#allocation5 + $0xae8] sm:$0xff]
    %v482 = vld [vmem:[#allocation5 + $0xaf0] sm:$0xff]
    %v483 = vld [vmem:[#allocation5 + $0xaf8] sm:$0xff]
    %v484 = vld [vmem:[#allocation5 + $0xb00] sm:$0xff]
    %v485 = vld [vmem:[#allocation5 + $0xb08] sm:$0xff]
    %v486 = vld [vmem:[#allocation5 + $0xb10] sm:$0xff]
    %v487 = vld [vmem:[#allocation5 + $0xb18] sm:$0xff]
    %v488 = vld [vmem:[#allocation5 + $0xb20] sm:$0xff]
    %v489 = vld [vmem:[#allocation5 + $0xb28] sm:$0xff]
    %v490 = vld [vmem:[#allocation5 + $0xb30] sm:$0xff]
    %v491 = vld [vmem:[#allocation5 + $0xb38] sm:$0xff]
    %v492 = vld [vmem:[#allocation5 + $0xb40] sm:$0xff]
    %v493 = vld [vmem:[#allocation5 + $0xb48] sm:$0xff]
    %v494 = vld [vmem:[#allocation5 + $0xb50] sm:$0xff]
    %v495 = vld [vmem:[#allocation5 + $0xb58] sm:$0xff]
    %v496 = vld [vmem:[#allocation5 + $0xb60] sm:$0xff]
    %v497 = vld [vmem:[#allocation5 + $0xb68] sm:$0xff]
    %v498 = vld [vmem:[#allocation5 + $0xb70] sm:$0xff]
    %v499 = vld [vmem:[#allocation5 + $0xb78] sm:$0xff]
    %v500 = vld [vmem:[#allocation5 + $0xb80] sm:$0xff]
    %v501 = vld [vmem:[#allocation5 + $0xb88] sm:$0xff]
    %v502 = vld [vmem:[#allocation5 + $0xb90] sm:$0xff]
    %v503 = vld [vmem:[#allocation5 + $0xb98] sm:$0xff]
    %v504 = vld [vmem:[#allocation5 + $0xba0] sm:$0xff]
    %v505 = vld [vmem:[#allocation5 + $0xba8] sm:$0xff]
    %v506 = vld [vmem:[#allocation5 + $0xbb0] sm:$0xff]
    %v507 = vld [vmem:[#allocation5 + $0xbb8] sm:$0xff]
    %v508 = vld [vmem:[#allocation5 + $0xbc0] sm:$0xff]
    %v509 = vld [vmem:[#allocation5 + $0xbc8] sm:$0xff]
    %v510 = vld [vmem:[#allocation5 + $0xbd0] sm:$0xff]
    %v511 = vld [vmem:[#allocation5 + $0xbd8] sm:$0xff]
    %v512 = vld [vmem:[#allocation5 + $0xbe0] sm:$0xff]
    %v513 = vld [vmem:[#allocation5 + $0xbe8] sm:$0xff]
    %v514 = vld [vmem:[#allocation5 + $0xbf0] sm:$0xff]
    %v515 = vld [vmem:[#allocation5 + $0xbf8] sm:$0xff]
    %v516 = vld [vmem:[#allocation7] sm:$0x3]
    %v518 = vlaneseq
    %v519 = vshrl.u32 %v518, 7
    %v520 = vsub.s32 0, %v519
    %v521 = vrot.slane %v516, %v520
    %v522 = vlaneseq
    %v523 = vshrl.u32 %v522, 7
    %v524 = vsub.s32 1, %v523
    %v525 = vrot.slane %v516, %v524
    %v912 = vunpack.c.l.b16 %v132
    %v913 = vunpack.c.h.b16 %v132
    %v914 = vunpack.c.l.b16 %v133
    %v915 = vunpack.c.h.b16 %v133
    %v916 = vunpack.c.l.b16 %v134
    %v917 = vunpack.c.h.b16 %v134
    %v918 = vunpack.c.l.b16 %v135
    %v919 = vunpack.c.h.b16 %v135
    %v920 = vunpack.c.l.b16 %v136
    %v921 = vunpack.c.h.b16 %v136
    %v922 = vunpack.c.l.b16 %v137
    %v923 = vunpack.c.h.b16 %v137
    %v924 = vunpack.c.l.b16 %v138
    %v925 = vunpack.c.h.b16 %v138
    %v926 = vunpack.c.l.b16 %v139
    %v927 = vunpack.c.h.b16 %v139
    %v928 = vunpack.c.l.b16 %v140
    %v929 = vunpack.c.h.b16 %v140
    %v930 = vunpack.c.l.b16 %v141
    %v931 = vunpack.c.h.b16 %v141
    %v932 = vunpack.c.l.b16 %v142
    %v933 = vunpack.c.h.b16 %v142
    %v934 = vunpack.c.l.b16 %v143
    %v935 = vunpack.c.h.b16 %v143
    %v936 = vunpack.c.l.b16 %v144
    %v937 = vunpack.c.h.b16 %v144
    %v938 = vunpack.c.l.b16 %v145
    %v939 = vunpack.c.h.b16 %v145
    %v940 = vunpack.c.l.b16 %v146
    %v941 = vunpack.c.h.b16 %v146
    %v942 = vunpack.c.l.b16 %v147
    %v943 = vunpack.c.h.b16 %v147
    %v944 = vunpack.c.l.b16 %v148
    %v945 = vunpack.c.h.b16 %v148
    %v946 = vunpack.c.l.b16 %v149
    %v947 = vunpack.c.h.b16 %v149
    %v948 = vunpack.c.l.b16 %v150
    %v949 = vunpack.c.h.b16 %v150
    %v950 = vunpack.c.l.b16 %v151
    %v951 = vunpack.c.h.b16 %v151
    %v952 = vunpack.c.l.b16 %v152
    %v953 = vunpack.c.h.b16 %v152
    %v954 = vunpack.c.l.b16 %v153
    %v955 = vunpack.c.h.b16 %v153
    %v956 = vunpack.c.l.b16 %v154
    %v957 = vunpack.c.h.b16 %v154
    %v958 = vunpack.c.l.b16 %v155
    %v959 = vunpack.c.h.b16 %v155
    %v960 = vunpack.c.l.b16 %v156
    %v961 = vunpack.c.h.b16 %v156
    %v962 = vunpack.c.l.b16 %v157
    %v963 = vunpack.c.h.b16 %v157
    %v964 = vunpack.c.l.b16 %v158
    %v965 = vunpack.c.h.b16 %v158
    %v966 = vunpack.c.l.b16 %v159
    %v967 = vunpack.c.h.b16 %v159
    %v968 = vunpack.c.l.b16 %v160
    %v969 = vunpack.c.h.b16 %v160
    %v970 = vunpack.c.l.b16 %v161
    %v971 = vunpack.c.h.b16 %v161
    %v972 = vunpack.c.l.b16 %v162
    %v973 = vunpack.c.h.b16 %v162
    %v974 = vunpack.c.l.b16 %v163
    %v975 = vunpack.c.h.b16 %v163
    %v976 = vunpack.c.l.b16 %v164
    %v977 = vunpack.c.h.b16 %v164
    %v978 = vunpack.c.l.b16 %v165
    %v979 = vunpack.c.h.b16 %v165
    %v980 = vunpack.c.l.b16 %v166
    %v981 = vunpack.c.h.b16 %v166
    %v982 = vunpack.c.l.b16 %v167
    %v983 = vunpack.c.h.b16 %v167
    %v984 = vunpack.c.l.b16 %v168
    %v985 = vunpack.c.h.b16 %v168
    %v986 = vunpack.c.l.b16 %v169
    %v987 = vunpack.c.h.b16 %v169
    %v988 = vunpack.c.l.b16 %v170
    %v989 = vunpack.c.h.b16 %v170
    %v990 = vunpack.c.l.b16 %v171
    %v991 = vunpack.c.h.b16 %v171
    %v992 = vunpack.c.l.b16 %v172
    %v993 = vunpack.c.h.b16 %v172
    %v994 = vunpack.c.l.b16 %v173
    %v995 = vunpack.c.h.b16 %v173
    %v996 = vunpack.c.l.b16 %v174
    %v997 = vunpack.c.h.b16 %v174
    %v998 = vunpack.c.l.b16 %v175
    %v999 = vunpack.c.h.b16 %v175
    %v1000 = vunpack.c.l.b16 %v176
    %v1001 = vunpack.c.h.b16 %v176
    %v1002 = vunpack.c.l.b16 %v177
    %v1003 = vunpack.c.h.b16 %v177
    %v1004 = vunpack.c.l.b16 %v178
    %v1005 = vunpack.c.h.b16 %v178
    %v1006 = vunpack.c.l.b16 %v179
    %v1007 = vunpack.c.h.b16 %v179
    %v1008 = vunpack.c.l.b16 %v180
    %v1009 = vunpack.c.h.b16 %v180
    %v1010 = vunpack.c.l.b16 %v181
    %v1011 = vunpack.c.h.b16 %v181
    %v1012 = vunpack.c.l.b16 %v182
    %v1013 = vunpack.c.h.b16 %v182
    %v1014 = vunpack.c.l.b16 %v183
    %v1015 = vunpack.c.h.b16 %v183
    %v1016 = vunpack.c.l.b16 %v184
    %v1017 = vunpack.c.h.b16 %v184
    %v1018 = vunpack.c.l.b16 %v185
    %v1019 = vunpack.c.h.b16 %v185
    %v1020 = vunpack.c.l.b16 %v186
    %v1021 = vunpack.c.h.b16 %v186
    %v1022 = vunpack.c.l.b16 %v187
    %v1023 = vunpack.c.h.b16 %v187
    %v1024 = vunpack.c.l.b16 %v188
    %v1025 = vunpack.c.h.b16 %v188
    %v1026 = vunpack.c.l.b16 %v189
    %v1027 = vunpack.c.h.b16 %v189
    %v1028 = vunpack.c.l.b16 %v190
    %v1029 = vunpack.c.h.b16 %v190
    %v1030 = vunpack.c.l.b16 %v191
    %v1031 = vunpack.c.h.b16 %v191
    %v1032 = vunpack.c.l.b16 %v192
    %v1033 = vunpack.c.h.b16 %v192
    %v1034 = vunpack.c.l.b16 %v193
    %v1035 = vunpack.c.h.b16 %v193
    %v1036 = vunpack.c.l.b16 %v194
    %v1037 = vunpack.c.h.b16 %v194
    %v1038 = vunpack.c.l.b16 %v195
    %v1039 = vunpack.c.h.b16 %v195
    %v1040 = vunpack.c.l.b16 %v196
    %v1041 = vunpack.c.h.b16 %v196
    %v1042 = vunpack.c.l.b16 %v197
    %v1043 = vunpack.c.h.b16 %v197
    %v1044 = vunpack.c.l.b16 %v198
    %v1045 = vunpack.c.h.b16 %v198
    %v1046 = vunpack.c.l.b16 %v199
    %v1047 = vunpack.c.h.b16 %v199
    %v1048 = vunpack.c.l.b16 %v200
    %v1049 = vunpack.c.h.b16 %v200
    %v1050 = vunpack.c.l.b16 %v201
    %v1051 = vunpack.c.h.b16 %v201
    %v1052 = vunpack.c.l.b16 %v202
    %v1053 = vunpack.c.h.b16 %v202
    %v1054 = vunpack.c.l.b16 %v203
    %v1055 = vunpack.c.h.b16 %v203
    %v1056 = vunpack.c.l.b16 %v204
    %v1057 = vunpack.c.h.b16 %v204
    %v1058 = vunpack.c.l.b16 %v205
    %v1059 = vunpack.c.h.b16 %v205
    %v1060 = vunpack.c.l.b16 %v206
    %v1061 = vunpack.c.h.b16 %v206
    %v1062 = vunpack.c.l.b16 %v207
    %v1063 = vunpack.c.h.b16 %v207
    %v1064 = vunpack.c.l.b16 %v208
    %v1065 = vunpack.c.h.b16 %v208
    %v1066 = vunpack.c.l.b16 %v209
    %v1067 = vunpack.c.h.b16 %v209
    %v1068 = vunpack.c.l.b16 %v210
    %v1069 = vunpack.c.h.b16 %v210
    %v1070 = vunpack.c.l.b16 %v211
    %v1071 = vunpack.c.h.b16 %v211
    %v1072 = vunpack.c.l.b16 %v212
    %v1073 = vunpack.c.h.b16 %v212
    %v1074 = vunpack.c.l.b16 %v213
    %v1075 = vunpack.c.h.b16 %v213
    %v1076 = vunpack.c.l.b16 %v214
    %v1077 = vunpack.c.h.b16 %v214
    %v1078 = vunpack.c.l.b16 %v215
    %v1079 = vunpack.c.h.b16 %v215
    %v1080 = vunpack.c.l.b16 %v216
    %v1081 = vunpack.c.h.b16 %v216
    %v1082 = vunpack.c.l.b16 %v217
    %v1083 = vunpack.c.h.b16 %v217
    %v1084 = vunpack.c.l.b16 %v218
    %v1085 = vunpack.c.h.b16 %v218
    %v1086 = vunpack.c.l.b16 %v219
    %v1087 = vunpack.c.h.b16 %v219
    %v1088 = vunpack.c.l.b16 %v220
    %v1089 = vunpack.c.h.b16 %v220
    %v1090 = vunpack.c.l.b16 %v221
    %v1091 = vunpack.c.h.b16 %v221
    %v1092 = vunpack.c.l.b16 %v222
    %v1093 = vunpack.c.h.b16 %v222
    %v1094 = vunpack.c.l.b16 %v223
    %v1095 = vunpack.c.h.b16 %v223
    %v1096 = vunpack.c.l.b16 %v224
    %v1097 = vunpack.c.h.b16 %v224
    %v1098 = vunpack.c.l.b16 %v225
    %v1099 = vunpack.c.h.b16 %v225
    %v1100 = vunpack.c.l.b16 %v226
    %v1101 = vunpack.c.h.b16 %v226
    %v1102 = vunpack.c.l.b16 %v227
    %v1103 = vunpack.c.h.b16 %v227
    %v1104 = vunpack.c.l.b16 %v228
    %v1105 = vunpack.c.h.b16 %v228
    %v1106 = vunpack.c.l.b16 %v229
    %v1107 = vunpack.c.h.b16 %v229
    %v1108 = vunpack.c.l.b16 %v230
    %v1109 = vunpack.c.h.b16 %v230
    %v1110 = vunpack.c.l.b16 %v231
    %v1111 = vunpack.c.h.b16 %v231
    %v1112 = vunpack.c.l.b16 %v232
    %v1113 = vunpack.c.h.b16 %v232
    %v1114 = vunpack.c.l.b16 %v233
    %v1115 = vunpack.c.h.b16 %v233
    %v1116 = vunpack.c.l.b16 %v234
    %v1117 = vunpack.c.h.b16 %v234
    %v1118 = vunpack.c.l.b16 %v235
    %v1119 = vunpack.c.h.b16 %v235
    %v1120 = vunpack.c.l.b16 %v236
    %v1121 = vunpack.c.h.b16 %v236
    %v1122 = vunpack.c.l.b16 %v237
    %v1123 = vunpack.c.h.b16 %v237
    %v1124 = vunpack.c.l.b16 %v238
    %v1125 = vunpack.c.h.b16 %v238
    %v1126 = vunpack.c.l.b16 %v239
    %v1127 = vunpack.c.h.b16 %v239
    %v1128 = vunpack.c.l.b16 %v240
    %v1129 = vunpack.c.h.b16 %v240
    %v1130 = vunpack.c.l.b16 %v241
    %v1131 = vunpack.c.h.b16 %v241
    %v1132 = vunpack.c.l.b16 %v242
    %v1133 = vunpack.c.h.b16 %v242
    %v1134 = vunpack.c.l.b16 %v243
    %v1135 = vunpack.c.h.b16 %v243
    %v1136 = vunpack.c.l.b16 %v244
    %v1137 = vunpack.c.h.b16 %v244
    %v1138 = vunpack.c.l.b16 %v245
    %v1139 = vunpack.c.h.b16 %v245
    %v1140 = vunpack.c.l.b16 %v246
    %v1141 = vunpack.c.h.b16 %v246
    %v1142 = vunpack.c.l.b16 %v247
    %v1143 = vunpack.c.h.b16 %v247
    %v1144 = vunpack.c.l.b16 %v248
    %v1145 = vunpack.c.h.b16 %v248
    %v1146 = vunpack.c.l.b16 %v249
    %v1147 = vunpack.c.h.b16 %v249
    %v1148 = vunpack.c.l.b16 %v250
    %v1149 = vunpack.c.h.b16 %v250
    %v1150 = vunpack.c.l.b16 %v251
    %v1151 = vunpack.c.h.b16 %v251
    %v1152 = vunpack.c.l.b16 %v252
    %v1153 = vunpack.c.h.b16 %v252
    %v1154 = vunpack.c.l.b16 %v253
    %v1155 = vunpack.c.h.b16 %v253
    %v1156 = vunpack.c.l.b16 %v254
    %v1157 = vunpack.c.h.b16 %v254
    %v1158 = vunpack.c.l.b16 %v255
    %v1159 = vunpack.c.h.b16 %v255
    %v1160 = vunpack.c.l.b16 %v256
    %v1161 = vunpack.c.h.b16 %v256
    %v1162 = vunpack.c.l.b16 %v257
    %v1163 = vunpack.c.h.b16 %v257
    %v1164 = vunpack.c.l.b16 %v258
    %v1165 = vunpack.c.h.b16 %v258
    %v1166 = vunpack.c.l.b16 %v259
    %v1167 = vunpack.c.h.b16 %v259
    %v1168 = vunpack.c.l.b16 %v260
    %v1169 = vunpack.c.h.b16 %v260
    %v1170 = vunpack.c.l.b16 %v261
    %v1171 = vunpack.c.h.b16 %v261
    %v1172 = vunpack.c.l.b16 %v262
    %v1173 = vunpack.c.h.b16 %v262
    %v1174 = vunpack.c.l.b16 %v263
    %v1175 = vunpack.c.h.b16 %v263
    %v1176 = vunpack.c.l.b16 %v264
    %v1177 = vunpack.c.h.b16 %v264
    %v1178 = vunpack.c.l.b16 %v265
    %v1179 = vunpack.c.h.b16 %v265
    %v1180 = vunpack.c.l.b16 %v266
    %v1181 = vunpack.c.h.b16 %v266
    %v1182 = vunpack.c.l.b16 %v267
    %v1183 = vunpack.c.h.b16 %v267
    %v1184 = vunpack.c.l.b16 %v268
    %v1185 = vunpack.c.h.b16 %v268
    %v1186 = vunpack.c.l.b16 %v269
    %v1187 = vunpack.c.h.b16 %v269
    %v1188 = vunpack.c.l.b16 %v270
    %v1189 = vunpack.c.h.b16 %v270
    %v1190 = vunpack.c.l.b16 %v271
    %v1191 = vunpack.c.h.b16 %v271
    %v1192 = vunpack.c.l.b16 %v272
    %v1193 = vunpack.c.h.b16 %v272
    %v1194 = vunpack.c.l.b16 %v273
    %v1195 = vunpack.c.h.b16 %v273
    %v1196 = vunpack.c.l.b16 %v274
    %v1197 = vunpack.c.h.b16 %v274
    %v1198 = vunpack.c.l.b16 %v275
    %v1199 = vunpack.c.h.b16 %v275
    %v1200 = vunpack.c.l.b16 %v276
    %v1201 = vunpack.c.h.b16 %v276
    %v1202 = vunpack.c.l.b16 %v277
    %v1203 = vunpack.c.h.b16 %v277
    %v1204 = vunpack.c.l.b16 %v278
    %v1205 = vunpack.c.h.b16 %v278
    %v1206 = vunpack.c.l.b16 %v279
    %v1207 = vunpack.c.h.b16 %v279
    %v1208 = vunpack.c.l.b16 %v280
    %v1209 = vunpack.c.h.b16 %v280
    %v1210 = vunpack.c.l.b16 %v281
    %v1211 = vunpack.c.h.b16 %v281
    %v1212 = vunpack.c.l.b16 %v282
    %v1213 = vunpack.c.h.b16 %v282
    %v1214 = vunpack.c.l.b16 %v283
    %v1215 = vunpack.c.h.b16 %v283
    %v1216 = vunpack.c.l.b16 %v284
    %v1217 = vunpack.c.h.b16 %v284
    %v1218 = vunpack.c.l.b16 %v285
    %v1219 = vunpack.c.h.b16 %v285
    %v1220 = vunpack.c.l.b16 %v286
    %v1221 = vunpack.c.h.b16 %v286
    %v1222 = vunpack.c.l.b16 %v287
    %v1223 = vunpack.c.h.b16 %v287
    %v1224 = vunpack.c.l.b16 %v288
    %v1225 = vunpack.c.h.b16 %v288
    %v1226 = vunpack.c.l.b16 %v289
    %v1227 = vunpack.c.h.b16 %v289
    %v1228 = vunpack.c.l.b16 %v290
    %v1229 = vunpack.c.h.b16 %v290
    %v1230 = vunpack.c.l.b16 %v291
    %v1231 = vunpack.c.h.b16 %v291
    %v1232 = vunpack.c.l.b16 %v292
    %v1233 = vunpack.c.h.b16 %v292
    %v1234 = vunpack.c.l.b16 %v293
    %v1235 = vunpack.c.h.b16 %v293
    %v1236 = vunpack.c.l.b16 %v294
    %v1237 = vunpack.c.h.b16 %v294
    %v1238 = vunpack.c.l.b16 %v295
    %v1239 = vunpack.c.h.b16 %v295
    %v1240 = vunpack.c.l.b16 %v296
    %v1241 = vunpack.c.h.b16 %v296
    %v1242 = vunpack.c.l.b16 %v297
    %v1243 = vunpack.c.h.b16 %v297
    %v1244 = vunpack.c.l.b16 %v298
    %v1245 = vunpack.c.h.b16 %v298
    %v1246 = vunpack.c.l.b16 %v299
    %v1247 = vunpack.c.h.b16 %v299
    %v1248 = vunpack.c.l.b16 %v300
    %v1249 = vunpack.c.h.b16 %v300
    %v1250 = vunpack.c.l.b16 %v301
    %v1251 = vunpack.c.h.b16 %v301
    %v1252 = vunpack.c.l.b16 %v302
    %v1253 = vunpack.c.h.b16 %v302
    %v1254 = vunpack.c.l.b16 %v303
    %v1255 = vunpack.c.h.b16 %v303
    %v1256 = vunpack.c.l.b16 %v304
    %v1257 = vunpack.c.h.b16 %v304
    %v1258 = vunpack.c.l.b16 %v305
    %v1259 = vunpack.c.h.b16 %v305
    %v1260 = vunpack.c.l.b16 %v306
    %v1261 = vunpack.c.h.b16 %v306
    %v1262 = vunpack.c.l.b16 %v307
    %v1263 = vunpack.c.h.b16 %v307
    %v1264 = vunpack.c.l.b16 %v308
    %v1265 = vunpack.c.h.b16 %v308
    %v1266 = vunpack.c.l.b16 %v309
    %v1267 = vunpack.c.h.b16 %v309
    %v1268 = vunpack.c.l.b16 %v310
    %v1269 = vunpack.c.h.b16 %v310
    %v1270 = vunpack.c.l.b16 %v311
    %v1271 = vunpack.c.h.b16 %v311
    %v1272 = vunpack.c.l.b16 %v312
    %v1273 = vunpack.c.h.b16 %v312
    %v1274 = vunpack.c.l.b16 %v313
    %v1275 = vunpack.c.h.b16 %v313
    %v1276 = vunpack.c.l.b16 %v314
    %v1277 = vunpack.c.h.b16 %v314
    %v1278 = vunpack.c.l.b16 %v315
    %v1279 = vunpack.c.h.b16 %v315
    %v1280 = vunpack.c.l.b16 %v316
    %v1281 = vunpack.c.h.b16 %v316
    %v1282 = vunpack.c.l.b16 %v317
    %v1283 = vunpack.c.h.b16 %v317
    %v1284 = vunpack.c.l.b16 %v318
    %v1285 = vunpack.c.h.b16 %v318
    %v1286 = vunpack.c.l.b16 %v319
    %v1287 = vunpack.c.h.b16 %v319
    %v1288 = vunpack.c.l.b16 %v320
    %v1289 = vunpack.c.h.b16 %v320
    %v1290 = vunpack.c.l.b16 %v321
    %v1291 = vunpack.c.h.b16 %v321
    %v1292 = vunpack.c.l.b16 %v322
    %v1293 = vunpack.c.h.b16 %v322
    %v1294 = vunpack.c.l.b16 %v323
    %v1295 = vunpack.c.h.b16 %v323
    %v1296 = vunpack.c.l.b16 %v324
    %v1297 = vunpack.c.h.b16 %v324
    %v1298 = vunpack.c.l.b16 %v325
    %v1299 = vunpack.c.h.b16 %v325
    %v1300 = vunpack.c.l.b16 %v326
    %v1301 = vunpack.c.h.b16 %v326
    %v1302 = vunpack.c.l.b16 %v327
    %v1303 = vunpack.c.h.b16 %v327
    %v1304 = vunpack.c.l.b16 %v328
    %v1305 = vunpack.c.h.b16 %v328
    %v1306 = vunpack.c.l.b16 %v329
    %v1307 = vunpack.c.h.b16 %v329
    %v1308 = vunpack.c.l.b16 %v330
    %v1309 = vunpack.c.h.b16 %v330
    %v1310 = vunpack.c.l.b16 %v331
    %v1311 = vunpack.c.h.b16 %v331
    %v1312 = vunpack.c.l.b16 %v332
    %v1313 = vunpack.c.h.b16 %v332
    %v1314 = vunpack.c.l.b16 %v333
    %v1315 = vunpack.c.h.b16 %v333
    %v1316 = vunpack.c.l.b16 %v334
    %v1317 = vunpack.c.h.b16 %v334
    %v1318 = vunpack.c.l.b16 %v335
    %v1319 = vunpack.c.h.b16 %v335
    %v1320 = vunpack.c.l.b16 %v336
    %v1321 = vunpack.c.h.b16 %v336
    %v1322 = vunpack.c.l.b16 %v337
    %v1323 = vunpack.c.h.b16 %v337
    %v1324 = vunpack.c.l.b16 %v338
    %v1325 = vunpack.c.h.b16 %v338
    %v1326 = vunpack.c.l.b16 %v339
    %v1327 = vunpack.c.h.b16 %v339
    %v1328 = vunpack.c.l.b16 %v340
    %v1329 = vunpack.c.h.b16 %v340
    %v1330 = vunpack.c.l.b16 %v341
    %v1331 = vunpack.c.h.b16 %v341
    %v1332 = vunpack.c.l.b16 %v342
    %v1333 = vunpack.c.h.b16 %v342
    %v1334 = vunpack.c.l.b16 %v343
    %v1335 = vunpack.c.h.b16 %v343
    %v1336 = vunpack.c.l.b16 %v344
    %v1337 = vunpack.c.h.b16 %v344
    %v1338 = vunpack.c.l.b16 %v345
    %v1339 = vunpack.c.h.b16 %v345
    %v1340 = vunpack.c.l.b16 %v346
    %v1341 = vunpack.c.h.b16 %v346
    %v1342 = vunpack.c.l.b16 %v347
    %v1343 = vunpack.c.h.b16 %v347
    %v1344 = vunpack.c.l.b16 %v348
    %v1345 = vunpack.c.h.b16 %v348
    %v1346 = vunpack.c.l.b16 %v349
    %v1347 = vunpack.c.h.b16 %v349
    %v1348 = vunpack.c.l.b16 %v350
    %v1349 = vunpack.c.h.b16 %v350
    %v1350 = vunpack.c.l.b16 %v351
    %v1351 = vunpack.c.h.b16 %v351
    %v1352 = vunpack.c.l.b16 %v352
    %v1353 = vunpack.c.h.b16 %v352
    %v1354 = vunpack.c.l.b16 %v353
    %v1355 = vunpack.c.h.b16 %v353
    %v1356 = vunpack.c.l.b16 %v354
    %v1357 = vunpack.c.h.b16 %v354
    %v1358 = vunpack.c.l.b16 %v355
    %v1359 = vunpack.c.h.b16 %v355
    %v1360 = vunpack.c.l.b16 %v356
    %v1361 = vunpack.c.h.b16 %v356
    %v1362 = vunpack.c.l.b16 %v357
    %v1363 = vunpack.c.h.b16 %v357
    %v1364 = vunpack.c.l.b16 %v358
    %v1365 = vunpack.c.h.b16 %v358
    %v1366 = vunpack.c.l.b16 %v359
    %v1367 = vunpack.c.h.b16 %v359
    %v1368 = vunpack.c.l.b16 %v360
    %v1369 = vunpack.c.h.b16 %v360
    %v1370 = vunpack.c.l.b16 %v361
    %v1371 = vunpack.c.h.b16 %v361
    %v1372 = vunpack.c.l.b16 %v362
    %v1373 = vunpack.c.h.b16 %v362
    %v1374 = vunpack.c.l.b16 %v363
    %v1375 = vunpack.c.h.b16 %v363
    %v1376 = vunpack.c.l.b16 %v364
    %v1377 = vunpack.c.h.b16 %v364
    %v1378 = vunpack.c.l.b16 %v365
    %v1379 = vunpack.c.h.b16 %v365
    %v1380 = vunpack.c.l.b16 %v366
    %v1381 = vunpack.c.h.b16 %v366
    %v1382 = vunpack.c.l.b16 %v367
    %v1383 = vunpack.c.h.b16 %v367
    %v1384 = vunpack.c.l.b16 %v368
    %v1385 = vunpack.c.h.b16 %v368
    %v1386 = vunpack.c.l.b16 %v369
    %v1387 = vunpack.c.h.b16 %v369
    %v1388 = vunpack.c.l.b16 %v370
    %v1389 = vunpack.c.h.b16 %v370
    %v1390 = vunpack.c.l.b16 %v371
    %v1391 = vunpack.c.h.b16 %v371
    %v1392 = vunpack.c.l.b16 %v372
    %v1393 = vunpack.c.h.b16 %v372
    %v1394 = vunpack.c.l.b16 %v373
    %v1395 = vunpack.c.h.b16 %v373
    %v1396 = vunpack.c.l.b16 %v374
    %v1397 = vunpack.c.h.b16 %v374
    %v1398 = vunpack.c.l.b16 %v375
    %v1399 = vunpack.c.h.b16 %v375
    %v1400 = vunpack.c.l.b16 %v376
    %v1401 = vunpack.c.h.b16 %v376
    %v1402 = vunpack.c.l.b16 %v377
    %v1403 = vunpack.c.h.b16 %v377
    %v1404 = vunpack.c.l.b16 %v378
    %v1405 = vunpack.c.h.b16 %v378
    %v1406 = vunpack.c.l.b16 %v379
    %v1407 = vunpack.c.h.b16 %v379
    %v1408 = vunpack.c.l.b16 %v380
    %v1409 = vunpack.c.h.b16 %v380
    %v1410 = vunpack.c.l.b16 %v381
    %v1411 = vunpack.c.h.b16 %v381
    %v1412 = vunpack.c.l.b16 %v382
    %v1413 = vunpack.c.h.b16 %v382
    %v1414 = vunpack.c.l.b16 %v383
    %v1415 = vunpack.c.h.b16 %v383
    %v1416 = vunpack.c.l.b16 %v384
    %v1417 = vunpack.c.h.b16 %v384
    %v1418 = vunpack.c.l.b16 %v385
    %v1419 = vunpack.c.h.b16 %v385
    %v1420 = vunpack.c.l.b16 %v386
    %v1421 = vunpack.c.h.b16 %v386
    %v1422 = vunpack.c.l.b16 %v387
    %v1423 = vunpack.c.h.b16 %v387
    %v1424 = vunpack.c.l.b16 %v388
    %v1425 = vunpack.c.h.b16 %v388
    %v1426 = vunpack.c.l.b16 %v389
    %v1427 = vunpack.c.h.b16 %v389
    %v1428 = vunpack.c.l.b16 %v390
    %v1429 = vunpack.c.h.b16 %v390
    %v1430 = vunpack.c.l.b16 %v391
    %v1431 = vunpack.c.h.b16 %v391
    %v1432 = vunpack.c.l.b16 %v392
    %v1433 = vunpack.c.h.b16 %v392
    %v1434 = vunpack.c.l.b16 %v393
    %v1435 = vunpack.c.h.b16 %v393
    %v1436 = vunpack.c.l.b16 %v394
    %v1437 = vunpack.c.h.b16 %v394
    %v1438 = vunpack.c.l.b16 %v395
    %v1439 = vunpack.c.h.b16 %v395
    %v1440 = vunpack.c.l.b16 %v396
    %v1441 = vunpack.c.h.b16 %v396
    %v1442 = vunpack.c.l.b16 %v397
    %v1443 = vunpack.c.h.b16 %v397
    %v1444 = vunpack.c.l.b16 %v398
    %v1445 = vunpack.c.h.b16 %v398
    %v1446 = vunpack.c.l.b16 %v399
    %v1447 = vunpack.c.h.b16 %v399
    %v1448 = vunpack.c.l.b16 %v400
    %v1449 = vunpack.c.h.b16 %v400
    %v1450 = vunpack.c.l.b16 %v401
    %v1451 = vunpack.c.h.b16 %v401
    %v1452 = vunpack.c.l.b16 %v402
    %v1453 = vunpack.c.h.b16 %v402
    %v1454 = vunpack.c.l.b16 %v403
    %v1455 = vunpack.c.h.b16 %v403
    %v1456 = vunpack.c.l.b16 %v404
    %v1457 = vunpack.c.h.b16 %v404
    %v1458 = vunpack.c.l.b16 %v405
    %v1459 = vunpack.c.h.b16 %v405
    %v1460 = vunpack.c.l.b16 %v406
    %v1461 = vunpack.c.h.b16 %v406
    %v1462 = vunpack.c.l.b16 %v407
    %v1463 = vunpack.c.h.b16 %v407
    %v1464 = vunpack.c.l.b16 %v408
    %v1465 = vunpack.c.h.b16 %v408
    %v1466 = vunpack.c.l.b16 %v409
    %v1467 = vunpack.c.h.b16 %v409
    %v1468 = vunpack.c.l.b16 %v410
    %v1469 = vunpack.c.h.b16 %v410
    %v1470 = vunpack.c.l.b16 %v411
    %v1471 = vunpack.c.h.b16 %v411
    %v1472 = vunpack.c.l.b16 %v412
    %v1473 = vunpack.c.h.b16 %v412
    %v1474 = vunpack.c.l.b16 %v413
    %v1475 = vunpack.c.h.b16 %v413
    %v1476 = vunpack.c.l.b16 %v414
    %v1477 = vunpack.c.h.b16 %v414
    %v1478 = vunpack.c.l.b16 %v415
    %v1479 = vunpack.c.h.b16 %v415
    %v1480 = vunpack.c.l.b16 %v416
    %v1481 = vunpack.c.h.b16 %v416
    %v1482 = vunpack.c.l.b16 %v417
    %v1483 = vunpack.c.h.b16 %v417
    %v1484 = vunpack.c.l.b16 %v418
    %v1485 = vunpack.c.h.b16 %v418
    %v1486 = vunpack.c.l.b16 %v419
    %v1487 = vunpack.c.h.b16 %v419
    %v1488 = vunpack.c.l.b16 %v420
    %v1489 = vunpack.c.h.b16 %v420
    %v1490 = vunpack.c.l.b16 %v421
    %v1491 = vunpack.c.h.b16 %v421
    %v1492 = vunpack.c.l.b16 %v422
    %v1493 = vunpack.c.h.b16 %v422
    %v1494 = vunpack.c.l.b16 %v423
    %v1495 = vunpack.c.h.b16 %v423
    %v1496 = vunpack.c.l.b16 %v424
    %v1497 = vunpack.c.h.b16 %v424
    %v1498 = vunpack.c.l.b16 %v425
    %v1499 = vunpack.c.h.b16 %v425
    %v1500 = vunpack.c.l.b16 %v426
    %v1501 = vunpack.c.h.b16 %v426
    %v1502 = vunpack.c.l.b16 %v427
    %v1503 = vunpack.c.h.b16 %v427
    %v1504 = vunpack.c.l.b16 %v428
    %v1505 = vunpack.c.h.b16 %v428
    %v1506 = vunpack.c.l.b16 %v429
    %v1507 = vunpack.c.h.b16 %v429
    %v1508 = vunpack.c.l.b16 %v430
    %v1509 = vunpack.c.h.b16 %v430
    %v1510 = vunpack.c.l.b16 %v431
    %v1511 = vunpack.c.h.b16 %v431
    %v1512 = vunpack.c.l.b16 %v432
    %v1513 = vunpack.c.h.b16 %v432
    %v1514 = vunpack.c.l.b16 %v433
    %v1515 = vunpack.c.h.b16 %v433
    %v1516 = vunpack.c.l.b16 %v434
    %v1517 = vunpack.c.h.b16 %v434
    %v1518 = vunpack.c.l.b16 %v435
    %v1519 = vunpack.c.h.b16 %v435
    %v1520 = vunpack.c.l.b16 %v436
    %v1521 = vunpack.c.h.b16 %v436
    %v1522 = vunpack.c.l.b16 %v437
    %v1523 = vunpack.c.h.b16 %v437
    %v1524 = vunpack.c.l.b16 %v438
    %v1525 = vunpack.c.h.b16 %v438
    %v1526 = vunpack.c.l.b16 %v439
    %v1527 = vunpack.c.h.b16 %v439
    %v1528 = vunpack.c.l.b16 %v440
    %v1529 = vunpack.c.h.b16 %v440
    %v1530 = vunpack.c.l.b16 %v441
    %v1531 = vunpack.c.h.b16 %v441
    %v1532 = vunpack.c.l.b16 %v442
    %v1533 = vunpack.c.h.b16 %v442
    %v1534 = vunpack.c.l.b16 %v443
    %v1535 = vunpack.c.h.b16 %v443
    %v1536 = vunpack.c.l.b16 %v444
    %v1537 = vunpack.c.h.b16 %v444
    %v1538 = vunpack.c.l.b16 %v445
    %v1539 = vunpack.c.h.b16 %v445
    %v1540 = vunpack.c.l.b16 %v446
    %v1541 = vunpack.c.h.b16 %v446
    %v1542 = vunpack.c.l.b16 %v447
    %v1543 = vunpack.c.h.b16 %v447
    %v1544 = vunpack.c.l.b16 %v448
    %v1545 = vunpack.c.h.b16 %v448
    %v1546 = vunpack.c.l.b16 %v449
    %v1547 = vunpack.c.h.b16 %v449
    %v1548 = vunpack.c.l.b16 %v450
    %v1549 = vunpack.c.h.b16 %v450
    %v1550 = vunpack.c.l.b16 %v451
    %v1551 = vunpack.c.h.b16 %v451
    %v1552 = vunpack.c.l.b16 %v452
    %v1553 = vunpack.c.h.b16 %v452
    %v1554 = vunpack.c.l.b16 %v453
    %v1555 = vunpack.c.h.b16 %v453
    %v1556 = vunpack.c.l.b16 %v454
    %v1557 = vunpack.c.h.b16 %v454
    %v1558 = vunpack.c.l.b16 %v455
    %v1559 = vunpack.c.h.b16 %v455
    %v1560 = vunpack.c.l.b16 %v456
    %v1561 = vunpack.c.h.b16 %v456
    %v1562 = vunpack.c.l.b16 %v457
    %v1563 = vunpack.c.h.b16 %v457
    %v1564 = vunpack.c.l.b16 %v458
    %v1565 = vunpack.c.h.b16 %v458
    %v1566 = vunpack.c.l.b16 %v459
    %v1567 = vunpack.c.h.b16 %v459
    %v1568 = vunpack.c.l.b16 %v460
    %v1569 = vunpack.c.h.b16 %v460
    %v1570 = vunpack.c.l.b16 %v461
    %v1571 = vunpack.c.h.b16 %v461
    %v1572 = vunpack.c.l.b16 %v462
    %v1573 = vunpack.c.h.b16 %v462
    %v1574 = vunpack.c.l.b16 %v463
    %v1575 = vunpack.c.h.b16 %v463
    %v1576 = vunpack.c.l.b16 %v464
    %v1577 = vunpack.c.h.b16 %v464
    %v1578 = vunpack.c.l.b16 %v465
    %v1579 = vunpack.c.h.b16 %v465
    %v1580 = vunpack.c.l.b16 %v466
    %v1581 = vunpack.c.h.b16 %v466
    %v1582 = vunpack.c.l.b16 %v467
    %v1583 = vunpack.c.h.b16 %v467
    %v1584 = vunpack.c.l.b16 %v468
    %v1585 = vunpack.c.h.b16 %v468
    %v1586 = vunpack.c.l.b16 %v469
    %v1587 = vunpack.c.h.b16 %v469
    %v1588 = vunpack.c.l.b16 %v470
    %v1589 = vunpack.c.h.b16 %v470
    %v1590 = vunpack.c.l.b16 %v471
    %v1591 = vunpack.c.h.b16 %v471
    %v1592 = vunpack.c.l.b16 %v472
    %v1593 = vunpack.c.h.b16 %v472
    %v1594 = vunpack.c.l.b16 %v473
    %v1595 = vunpack.c.h.b16 %v473
    %v1596 = vunpack.c.l.b16 %v474
    %v1597 = vunpack.c.h.b16 %v474
    %v1598 = vunpack.c.l.b16 %v475
    %v1599 = vunpack.c.h.b16 %v475
    %v1600 = vunpack.c.l.b16 %v476
    %v1601 = vunpack.c.h.b16 %v476
    %v1602 = vunpack.c.l.b16 %v477
    %v1603 = vunpack.c.h.b16 %v477
    %v1604 = vunpack.c.l.b16 %v478
    %v1605 = vunpack.c.h.b16 %v478
    %v1606 = vunpack.c.l.b16 %v479
    %v1607 = vunpack.c.h.b16 %v479
    %v1608 = vunpack.c.l.b16 %v480
    %v1609 = vunpack.c.h.b16 %v480
    %v1610 = vunpack.c.l.b16 %v481
    %v1611 = vunpack.c.h.b16 %v481
    %v1612 = vunpack.c.l.b16 %v482
    %v1613 = vunpack.c.h.b16 %v482
    %v1614 = vunpack.c.l.b16 %v483
    %v1615 = vunpack.c.h.b16 %v483
    %v1616 = vunpack.c.l.b16 %v484
    %v1617 = vunpack.c.h.b16 %v484
    %v1618 = vunpack.c.l.b16 %v485
    %v1619 = vunpack.c.h.b16 %v485
    %v1620 = vunpack.c.l.b16 %v486
    %v1621 = vunpack.c.h.b16 %v486
    %v1622 = vunpack.c.l.b16 %v487
    %v1623 = vunpack.c.h.b16 %v487
    %v1624 = vunpack.c.l.b16 %v488
    %v1625 = vunpack.c.h.b16 %v488
    %v1626 = vunpack.c.l.b16 %v489
    %v1627 = vunpack.c.h.b16 %v489
    %v1628 = vunpack.c.l.b16 %v490
    %v1629 = vunpack.c.h.b16 %v490
    %v1630 = vunpack.c.l.b16 %v491
    %v1631 = vunpack.c.h.b16 %v491
    %v1632 = vunpack.c.l.b16 %v492
    %v1633 = vunpack.c.h.b16 %v492
    %v1634 = vunpack.c.l.b16 %v493
    %v1635 = vunpack.c.h.b16 %v493
    %v1636 = vunpack.c.l.b16 %v494
    %v1637 = vunpack.c.h.b16 %v494
    %v1638 = vunpack.c.l.b16 %v495
    %v1639 = vunpack.c.h.b16 %v495
    %v1640 = vunpack.c.l.b16 %v496
    %v1641 = vunpack.c.h.b16 %v496
    %v1642 = vunpack.c.l.b16 %v497
    %v1643 = vunpack.c.h.b16 %v497
    %v1644 = vunpack.c.l.b16 %v498
    %v1645 = vunpack.c.h.b16 %v498
    %v1646 = vunpack.c.l.b16 %v499
    %v1647 = vunpack.c.h.b16 %v499
    %v1648 = vunpack.c.l.b16 %v500
    %v1649 = vunpack.c.h.b16 %v500
    %v1650 = vunpack.c.l.b16 %v501
    %v1651 = vunpack.c.h.b16 %v501
    %v1652 = vunpack.c.l.b16 %v502
    %v1653 = vunpack.c.h.b16 %v502
    %v1654 = vunpack.c.l.b16 %v503
    %v1655 = vunpack.c.h.b16 %v503
    %v1656 = vunpack.c.l.b16 %v504
    %v1657 = vunpack.c.h.b16 %v504
    %v1658 = vunpack.c.l.b16 %v505
    %v1659 = vunpack.c.h.b16 %v505
    %v1660 = vunpack.c.l.b16 %v506
    %v1661 = vunpack.c.h.b16 %v506
    %v1662 = vunpack.c.l.b16 %v507
    %v1663 = vunpack.c.h.b16 %v507
    %v1664 = vunpack.c.l.b16 %v508
    %v1665 = vunpack.c.h.b16 %v508
    %v1666 = vunpack.c.l.b16 %v509
    %v1667 = vunpack.c.h.b16 %v509
    %v1668 = vunpack.c.l.b16 %v510
    %v1669 = vunpack.c.h.b16 %v510
    %v1670 = vunpack.c.l.b16 %v511
    %v1671 = vunpack.c.h.b16 %v511
    %v1672 = vunpack.c.l.b16 %v512
    %v1673 = vunpack.c.h.b16 %v512
    %v1674 = vunpack.c.l.b16 %v513
    %v1675 = vunpack.c.h.b16 %v513
    %v1676 = vunpack.c.l.b16 %v514
    %v1677 = vunpack.c.h.b16 %v514
    %v1678 = vunpack.c.l.b16 %v515
    %v1679 = vunpack.c.h.b16 %v515
    %v1680 = vpack.c.b16 %v936, %v912
    %v1681 = vpack.c.b16 %v937, %v913
    %v1682 = vpack.c.b16 %v938, %v914
    %v1683 = vpack.c.b16 %v939, %v915
    %v1684 = vpack.c.b16 %v940, %v916
    %v1685 = vpack.c.b16 %v941, %v917
    %v1686 = vpack.c.b16 %v942, %v918
    %v1687 = vpack.c.b16 %v943, %v919
    %v1688 = vpack.c.b16 %v944, %v920
    %v1689 = vpack.c.b16 %v945, %v921
    %v1690 = vpack.c.b16 %v946, %v922
    %v1691 = vpack.c.b16 %v947, %v923
    %v1692 = vpack.c.b16 %v948, %v924
    %v1693 = vpack.c.b16 %v949, %v925
    %v1694 = vpack.c.b16 %v950, %v926
    %v1695 = vpack.c.b16 %v951, %v927
    %v1696 = vpack.c.b16 %v952, %v928
    %v1697 = vpack.c.b16 %v953, %v929
    %v1698 = vpack.c.b16 %v954, %v930
    %v1699 = vpack.c.b16 %v955, %v931
    %v1700 = vpack.c.b16 %v956, %v932
    %v1701 = vpack.c.b16 %v957, %v933
    %v1702 = vpack.c.b16 %v958, %v934
    %v1703 = vpack.c.b16 %v959, %v935
    %v1704 = vpack.c.b16 %v984, %v960
    %v1705 = vpack.c.b16 %v985, %v961
    %v1706 = vpack.c.b16 %v986, %v962
    %v1707 = vpack.c.b16 %v987, %v963
    %v1708 = vpack.c.b16 %v988, %v964
    %v1709 = vpack.c.b16 %v989, %v965
    %v1710 = vpack.c.b16 %v990, %v966
    %v1711 = vpack.c.b16 %v991, %v967
    %v1712 = vpack.c.b16 %v992, %v968
    %v1713 = vpack.c.b16 %v993, %v969
    %v1714 = vpack.c.b16 %v994, %v970
    %v1715 = vpack.c.b16 %v995, %v971
    %v1716 = vpack.c.b16 %v996, %v972
    %v1717 = vpack.c.b16 %v997, %v973
    %v1718 = vpack.c.b16 %v998, %v974
    %v1719 = vpack.c.b16 %v999, %v975
    %v1720 = vpack.c.b16 %v1000, %v976
    %v1721 = vpack.c.b16 %v1001, %v977
    %v1722 = vpack.c.b16 %v1002, %v978
    %v1723 = vpack.c.b16 %v1003, %v979
    %v1724 = vpack.c.b16 %v1004, %v980
    %v1725 = vpack.c.b16 %v1005, %v981
    %v1726 = vpack.c.b16 %v1006, %v982
    %v1727 = vpack.c.b16 %v1007, %v983
    %v1728 = vpack.c.b16 %v1032, %v1008
    %v1729 = vpack.c.b16 %v1033, %v1009
    %v1730 = vpack.c.b16 %v1034, %v1010
    %v1731 = vpack.c.b16 %v1035, %v1011
    %v1732 = vpack.c.b16 %v1036, %v1012
    %v1733 = vpack.c.b16 %v1037, %v1013
    %v1734 = vpack.c.b16 %v1038, %v1014
    %v1735 = vpack.c.b16 %v1039, %v1015
    %v1736 = vpack.c.b16 %v1040, %v1016
    %v1737 = vpack.c.b16 %v1041, %v1017
    %v1738 = vpack.c.b16 %v1042, %v1018
    %v1739 = vpack.c.b16 %v1043, %v1019
    %v1740 = vpack.c.b16 %v1044, %v1020
    %v1741 = vpack.c.b16 %v1045, %v1021
    %v1742 = vpack.c.b16 %v1046, %v1022
    %v1743 = vpack.c.b16 %v1047, %v1023
    %v1744 = vpack.c.b16 %v1048, %v1024
    %v1745 = vpack.c.b16 %v1049, %v1025
    %v1746 = vpack.c.b16 %v1050, %v1026
    %v1747 = vpack.c.b16 %v1051, %v1027
    %v1748 = vpack.c.b16 %v1052, %v1028
    %v1749 = vpack.c.b16 %v1053, %v1029
    %v1750 = vpack.c.b16 %v1054, %v1030
    %v1751 = vpack.c.b16 %v1055, %v1031
    %v1752 = vpack.c.b16 %v1080, %v1056
    %v1753 = vpack.c.b16 %v1081, %v1057
    %v1754 = vpack.c.b16 %v1082, %v1058
    %v1755 = vpack.c.b16 %v1083, %v1059
    %v1756 = vpack.c.b16 %v1084, %v1060
    %v1757 = vpack.c.b16 %v1085, %v1061
    %v1758 = vpack.c.b16 %v1086, %v1062
    %v1759 = vpack.c.b16 %v1087, %v1063
    %v1760 = vpack.c.b16 %v1088, %v1064
    %v1761 = vpack.c.b16 %v1089, %v1065
    %v1762 = vpack.c.b16 %v1090, %v1066
    %v1763 = vpack.c.b16 %v1091, %v1067
    %v1764 = vpack.c.b16 %v1092, %v1068
    %v1765 = vpack.c.b16 %v1093, %v1069
    %v1766 = vpack.c.b16 %v1094, %v1070
    %v1767 = vpack.c.b16 %v1095, %v1071
    %v1768 = vpack.c.b16 %v1096, %v1072
    %v1769 = vpack.c.b16 %v1097, %v1073
    %v1770 = vpack.c.b16 %v1098, %v1074
    %v1771 = vpack.c.b16 %v1099, %v1075
    %v1772 = vpack.c.b16 %v1100, %v1076
    %v1773 = vpack.c.b16 %v1101, %v1077
    %v1774 = vpack.c.b16 %v1102, %v1078
    %v1775 = vpack.c.b16 %v1103, %v1079
    %v1776 = vpack.c.b16 %v1128, %v1104
    %v1777 = vpack.c.b16 %v1129, %v1105
    %v1778 = vpack.c.b16 %v1130, %v1106
    %v1779 = vpack.c.b16 %v1131, %v1107
    %v1780 = vpack.c.b16 %v1132, %v1108
    %v1781 = vpack.c.b16 %v1133, %v1109
    %v1782 = vpack.c.b16 %v1134, %v1110
    %v1783 = vpack.c.b16 %v1135, %v1111
    %v1784 = vpack.c.b16 %v1136, %v1112
    %v1785 = vpack.c.b16 %v1137, %v1113
    %v1786 = vpack.c.b16 %v1138, %v1114
    %v1787 = vpack.c.b16 %v1139, %v1115
    %v1788 = vpack.c.b16 %v1140, %v1116
    %v1789 = vpack.c.b16 %v1141, %v1117
    %v1790 = vpack.c.b16 %v1142, %v1118
    %v1791 = vpack.c.b16 %v1143, %v1119
    %v1792 = vpack.c.b16 %v1144, %v1120
    %v1793 = vpack.c.b16 %v1145, %v1121
    %v1794 = vpack.c.b16 %v1146, %v1122
    %v1795 = vpack.c.b16 %v1147, %v1123
    %v1796 = vpack.c.b16 %v1148, %v1124
    %v1797 = vpack.c.b16 %v1149, %v1125
    %v1798 = vpack.c.b16 %v1150, %v1126
    %v1799 = vpack.c.b16 %v1151, %v1127
    %v1800 = vpack.c.b16 %v1176, %v1152
    %v1801 = vpack.c.b16 %v1177, %v1153
    %v1802 = vpack.c.b16 %v1178, %v1154
    %v1803 = vpack.c.b16 %v1179, %v1155
    %v1804 = vpack.c.b16 %v1180, %v1156
    %v1805 = vpack.c.b16 %v1181, %v1157
    %v1806 = vpack.c.b16 %v1182, %v1158
    %v1807 = vpack.c.b16 %v1183, %v1159
    %v1808 = vpack.c.b16 %v1184, %v1160
    %v1809 = vpack.c.b16 %v1185, %v1161
    %v1810 = vpack.c.b16 %v1186, %v1162
    %v1811 = vpack.c.b16 %v1187, %v1163
    %v1812 = vpack.c.b16 %v1188, %v1164
    %v1813 = vpack.c.b16 %v1189, %v1165
    %v1814 = vpack.c.b16 %v1190, %v1166
    %v1815 = vpack.c.b16 %v1191, %v1167
    %v1816 = vpack.c.b16 %v1192, %v1168
    %v1817 = vpack.c.b16 %v1193, %v1169
    %v1818 = vpack.c.b16 %v1194, %v1170
    %v1819 = vpack.c.b16 %v1195, %v1171
    %v1820 = vpack.c.b16 %v1196, %v1172
    %v1821 = vpack.c.b16 %v1197, %v1173
    %v1822 = vpack.c.b16 %v1198, %v1174
    %v1823 = vpack.c.b16 %v1199, %v1175
    %v1824 = vpack.c.b16 %v1224, %v1200
    %v1825 = vpack.c.b16 %v1225, %v1201
    %v1826 = vpack.c.b16 %v1226, %v1202
    %v1827 = vpack.c.b16 %v1227, %v1203
    %v1828 = vpack.c.b16 %v1228, %v1204
    %v1829 = vpack.c.b16 %v1229, %v1205
    %v1830 = vpack.c.b16 %v1230, %v1206
    %v1831 = vpack.c.b16 %v1231, %v1207
    %v1832 = vpack.c.b16 %v1232, %v1208
    %v1833 = vpack.c.b16 %v1233, %v1209
    %v1834 = vpack.c.b16 %v1234, %v1210
    %v1835 = vpack.c.b16 %v1235, %v1211
    %v1836 = vpack.c.b16 %v1236, %v1212
    %v1837 = vpack.c.b16 %v1237, %v1213
    %v1838 = vpack.c.b16 %v1238, %v1214
    %v1839 = vpack.c.b16 %v1239, %v1215
    %v1840 = vpack.c.b16 %v1240, %v1216
    %v1841 = vpack.c.b16 %v1241, %v1217
    %v1842 = vpack.c.b16 %v1242, %v1218
    %v1843 = vpack.c.b16 %v1243, %v1219
    %v1844 = vpack.c.b16 %v1244, %v1220
    %v1845 = vpack.c.b16 %v1245, %v1221
    %v1846 = vpack.c.b16 %v1246, %v1222
    %v1847 = vpack.c.b16 %v1247, %v1223
    %v1848 = vpack.c.b16 %v1272, %v1248
    %v1849 = vpack.c.b16 %v1273, %v1249
    %v1850 = vpack.c.b16 %v1274, %v1250
    %v1851 = vpack.c.b16 %v1275, %v1251
    %v1852 = vpack.c.b16 %v1276, %v1252
    %v1853 = vpack.c.b16 %v1277, %v1253
    %v1854 = vpack.c.b16 %v1278, %v1254
    %v1855 = vpack.c.b16 %v1279, %v1255
    %v1856 = vpack.c.b16 %v1280, %v1256
    %v1857 = vpack.c.b16 %v1281, %v1257
    %v1858 = vpack.c.b16 %v1282, %v1258
    %v1859 = vpack.c.b16 %v1283, %v1259
    %v1860 = vpack.c.b16 %v1284, %v1260
    %v1861 = vpack.c.b16 %v1285, %v1261
    %v1862 = vpack.c.b16 %v1286, %v1262
    %v1863 = vpack.c.b16 %v1287, %v1263
    %v1864 = vpack.c.b16 %v1288, %v1264
    %v1865 = vpack.c.b16 %v1289, %v1265
    %v1866 = vpack.c.b16 %v1290, %v1266
    %v1867 = vpack.c.b16 %v1291, %v1267
    %v1868 = vpack.c.b16 %v1292, %v1268
    %v1869 = vpack.c.b16 %v1293, %v1269
    %v1870 = vpack.c.b16 %v1294, %v1270
    %v1871 = vpack.c.b16 %v1295, %v1271
    %v1872 = vpack.c.b16 %v1320, %v1296
    %v1873 = vpack.c.b16 %v1321, %v1297
    %v1874 = vpack.c.b16 %v1322, %v1298
    %v1875 = vpack.c.b16 %v1323, %v1299
    %v1876 = vpack.c.b16 %v1324, %v1300
    %v1877 = vpack.c.b16 %v1325, %v1301
    %v1878 = vpack.c.b16 %v1326, %v1302
    %v1879 = vpack.c.b16 %v1327, %v1303
    %v1880 = vpack.c.b16 %v1328, %v1304
    %v1881 = vpack.c.b16 %v1329, %v1305
    %v1882 = vpack.c.b16 %v1330, %v1306
    %v1883 = vpack.c.b16 %v1331, %v1307
    %v1884 = vpack.c.b16 %v1332, %v1308
    %v1885 = vpack.c.b16 %v1333, %v1309
    %v1886 = vpack.c.b16 %v1334, %v1310
    %v1887 = vpack.c.b16 %v1335, %v1311
    %v1888 = vpack.c.b16 %v1336, %v1312
    %v1889 = vpack.c.b16 %v1337, %v1313
    %v1890 = vpack.c.b16 %v1338, %v1314
    %v1891 = vpack.c.b16 %v1339, %v1315
    %v1892 = vpack.c.b16 %v1340, %v1316
    %v1893 = vpack.c.b16 %v1341, %v1317
    %v1894 = vpack.c.b16 %v1342, %v1318
    %v1895 = vpack.c.b16 %v1343, %v1319
    %v1896 = vpack.c.b16 %v1368, %v1344
    %v1897 = vpack.c.b16 %v1369, %v1345
    %v1898 = vpack.c.b16 %v1370, %v1346
    %v1899 = vpack.c.b16 %v1371, %v1347
    %v1900 = vpack.c.b16 %v1372, %v1348
    %v1901 = vpack.c.b16 %v1373, %v1349
    %v1902 = vpack.c.b16 %v1374, %v1350
    %v1903 = vpack.c.b16 %v1375, %v1351
    %v1904 = vpack.c.b16 %v1376, %v1352
    %v1905 = vpack.c.b16 %v1377, %v1353
    %v1906 = vpack.c.b16 %v1378, %v1354
    %v1907 = vpack.c.b16 %v1379, %v1355
    %v1908 = vpack.c.b16 %v1380, %v1356
    %v1909 = vpack.c.b16 %v1381, %v1357
    %v1910 = vpack.c.b16 %v1382, %v1358
    %v1911 = vpack.c.b16 %v1383, %v1359
    %v1912 = vpack.c.b16 %v1384, %v1360
    %v1913 = vpack.c.b16 %v1385, %v1361
    %v1914 = vpack.c.b16 %v1386, %v1362
    %v1915 = vpack.c.b16 %v1387, %v1363
    %v1916 = vpack.c.b16 %v1388, %v1364
    %v1917 = vpack.c.b16 %v1389, %v1365
    %v1918 = vpack.c.b16 %v1390, %v1366
    %v1919 = vpack.c.b16 %v1391, %v1367
    %v1920 = vpack.c.b16 %v1416, %v1392
    %v1921 = vpack.c.b16 %v1417, %v1393
    %v1922 = vpack.c.b16 %v1418, %v1394
    %v1923 = vpack.c.b16 %v1419, %v1395
    %v1924 = vpack.c.b16 %v1420, %v1396
    %v1925 = vpack.c.b16 %v1421, %v1397
    %v1926 = vpack.c.b16 %v1422, %v1398
    %v1927 = vpack.c.b16 %v1423, %v1399
    %v1928 = vpack.c.b16 %v1424, %v1400
    %v1929 = vpack.c.b16 %v1425, %v1401
    %v1930 = vpack.c.b16 %v1426, %v1402
    %v1931 = vpack.c.b16 %v1427, %v1403
    %v1932 = vpack.c.b16 %v1428, %v1404
    %v1933 = vpack.c.b16 %v1429, %v1405
    %v1934 = vpack.c.b16 %v1430, %v1406
    %v1935 = vpack.c.b16 %v1431, %v1407
    %v1936 = vpack.c.b16 %v1432, %v1408
    %v1937 = vpack.c.b16 %v1433, %v1409
    %v1938 = vpack.c.b16 %v1434, %v1410
    %v1939 = vpack.c.b16 %v1435, %v1411
    %v1940 = vpack.c.b16 %v1436, %v1412
    %v1941 = vpack.c.b16 %v1437, %v1413
    %v1942 = vpack.c.b16 %v1438, %v1414
    %v1943 = vpack.c.b16 %v1439, %v1415
    %v1944 = vpack.c.b16 %v1464, %v1440
    %v1945 = vpack.c.b16 %v1465, %v1441
    %v1946 = vpack.c.b16 %v1466, %v1442
    %v1947 = vpack.c.b16 %v1467, %v1443
    %v1948 = vpack.c.b16 %v1468, %v1444
    %v1949 = vpack.c.b16 %v1469, %v1445
    %v1950 = vpack.c.b16 %v1470, %v1446
    %v1951 = vpack.c.b16 %v1471, %v1447
    %v1952 = vpack.c.b16 %v1472, %v1448
    %v1953 = vpack.c.b16 %v1473, %v1449
    %v1954 = vpack.c.b16 %v1474, %v1450
    %v1955 = vpack.c.b16 %v1475, %v1451
    %v1956 = vpack.c.b16 %v1476, %v1452
    %v1957 = vpack.c.b16 %v1477, %v1453
    %v1958 = vpack.c.b16 %v1478, %v1454
    %v1959 = vpack.c.b16 %v1479, %v1455
    %v1960 = vpack.c.b16 %v1480, %v1456
    %v1961 = vpack.c.b16 %v1481, %v1457
    %v1962 = vpack.c.b16 %v1482, %v1458
    %v1963 = vpack.c.b16 %v1483, %v1459
    %v1964 = vpack.c.b16 %v1484, %v1460
    %v1965 = vpack.c.b16 %v1485, %v1461
    %v1966 = vpack.c.b16 %v1486, %v1462
    %v1967 = vpack.c.b16 %v1487, %v1463
    %v1968 = vpack.c.b16 %v1512, %v1488
    %v1969 = vpack.c.b16 %v1513, %v1489
    %v1970 = vpack.c.b16 %v1514, %v1490
    %v1971 = vpack.c.b16 %v1515, %v1491
    %v1972 = vpack.c.b16 %v1516, %v1492
    %v1973 = vpack.c.b16 %v1517, %v1493
    %v1974 = vpack.c.b16 %v1518, %v1494
    %v1975 = vpack.c.b16 %v1519, %v1495
    %v1976 = vpack.c.b16 %v1520, %v1496
    %v1977 = vpack.c.b16 %v1521, %v1497
    %v1978 = vpack.c.b16 %v1522, %v1498
    %v1979 = vpack.c.b16 %v1523, %v1499
    %v1980 = vpack.c.b16 %v1524, %v1500
    %v1981 = vpack.c.b16 %v1525, %v1501
    %v1982 = vpack.c.b16 %v1526, %v1502
    %v1983 = vpack.c.b16 %v1527, %v1503
    %v1984 = vpack.c.b16 %v1528, %v1504
    %v1985 = vpack.c.b16 %v1529, %v1505
    %v1986 = vpack.c.b16 %v1530, %v1506
    %v1987 = vpack.c.b16 %v1531, %v1507
    %v1988 = vpack.c.b16 %v1532, %v1508
    %v1989 = vpack.c.b16 %v1533, %v1509
    %v1990 = vpack.c.b16 %v1534, %v1510
    %v1991 = vpack.c.b16 %v1535, %v1511
    %v1992 = vpack.c.b16 %v1560, %v1536
    %v1993 = vpack.c.b16 %v1561, %v1537
    %v1994 = vpack.c.b16 %v1562, %v1538
    %v1995 = vpack.c.b16 %v1563, %v1539
    %v1996 = vpack.c.b16 %v1564, %v1540
    %v1997 = vpack.c.b16 %v1565, %v1541
    %v1998 = vpack.c.b16 %v1566, %v1542
    %v1999 = vpack.c.b16 %v1567, %v1543
    %v2000 = vpack.c.b16 %v1568, %v1544
    %v2001 = vpack.c.b16 %v1569, %v1545
    %v2002 = vpack.c.b16 %v1570, %v1546
    %v2003 = vpack.c.b16 %v1571, %v1547
    %v2004 = vpack.c.b16 %v1572, %v1548
    %v2005 = vpack.c.b16 %v1573, %v1549
    %v2006 = vpack.c.b16 %v1574, %v1550
    %v2007 = vpack.c.b16 %v1575, %v1551
    %v2008 = vpack.c.b16 %v1576, %v1552
    %v2009 = vpack.c.b16 %v1577, %v1553
    %v2010 = vpack.c.b16 %v1578, %v1554
    %v2011 = vpack.c.b16 %v1579, %v1555
    %v2012 = vpack.c.b16 %v1580, %v1556
    %v2013 = vpack.c.b16 %v1581, %v1557
    %v2014 = vpack.c.b16 %v1582, %v1558
    %v2015 = vpack.c.b16 %v1583, %v1559
    %v2016 = vpack.c.b16 %v1608, %v1584
    %v2017 = vpack.c.b16 %v1609, %v1585
    %v2018 = vpack.c.b16 %v1610, %v1586
    %v2019 = vpack.c.b16 %v1611, %v1587
    %v2020 = vpack.c.b16 %v1612, %v1588
    %v2021 = vpack.c.b16 %v1613, %v1589
    %v2022 = vpack.c.b16 %v1614, %v1590
    %v2023 = vpack.c.b16 %v1615, %v1591
    %v2024 = vpack.c.b16 %v1616, %v1592
    %v2025 = vpack.c.b16 %v1617, %v1593
    %v2026 = vpack.c.b16 %v1618, %v1594
    %v2027 = vpack.c.b16 %v1619, %v1595
    %v2028 = vpack.c.b16 %v1620, %v1596
    %v2029 = vpack.c.b16 %v1621, %v1597
    %v2030 = vpack.c.b16 %v1622, %v1598
    %v2031 = vpack.c.b16 %v1623, %v1599
    %v2032 = vpack.c.b16 %v1624, %v1600
    %v2033 = vpack.c.b16 %v1625, %v1601
    %v2034 = vpack.c.b16 %v1626, %v1602
    %v2035 = vpack.c.b16 %v1627, %v1603
    %v2036 = vpack.c.b16 %v1628, %v1604
    %v2037 = vpack.c.b16 %v1629, %v1605
    %v2038 = vpack.c.b16 %v1630, %v1606
    %v2039 = vpack.c.b16 %v1631, %v1607
    %v2040 = vpack.c.b16 %v1656, %v1632
    %v2041 = vpack.c.b16 %v1657, %v1633
    %v2042 = vpack.c.b16 %v1658, %v1634
    %v2043 = vpack.c.b16 %v1659, %v1635
    %v2044 = vpack.c.b16 %v1660, %v1636
    %v2045 = vpack.c.b16 %v1661, %v1637
    %v2046 = vpack.c.b16 %v1662, %v1638
    %v2047 = vpack.c.b16 %v1663, %v1639
    %v2048 = vpack.c.b16 %v1664, %v1640
    %v2049 = vpack.c.b16 %v1665, %v1641
    %v2050 = vpack.c.b16 %v1666, %v1642
    %v2051 = vpack.c.b16 %v1667, %v1643
    %v2052 = vpack.c.b16 %v1668, %v1644
    %v2053 = vpack.c.b16 %v1669, %v1645
    %v2054 = vpack.c.b16 %v1670, %v1646
    %v2055 = vpack.c.b16 %v1671, %v1647
    %v2056 = vpack.c.b16 %v1672, %v1648
    %v2057 = vpack.c.b16 %v1673, %v1649
    %v2058 = vpack.c.b16 %v1674, %v1650
    %v2059 = vpack.c.b16 %v1675, %v1651
    %v2060 = vpack.c.b16 %v1676, %v1652
    %v2061 = vpack.c.b16 %v1677, %v1653
    %v2062 = vpack.c.b16 %v1678, %v1654
    %v2063 = vpack.c.b16 %v1679, %v1655
    %2448 = vmatprep.subr.bf16.mxu0 %v1849
    %2449 = vmatpush1.bf16.xpose.msra.mxu0 %v1848
    %2450 = vmatprep.subr.bf16.mxu0 %v1825
    %2451 = vmatpush1.bf16.xpose.msra.mxu0 %v1824
    %2452 = vmatprep.subr.bf16.mxu0 %v1801
    %2453 = vmatpush1.bf16.xpose.msra.mxu0 %v1800
    %2454 = vmatprep.subr.bf16.mxu0 %v1777
    %2455 = vmatpush1.bf16.xpose.msra.mxu0 %v1776
    %2456 = vmatprep.subr.bf16.mxu0 %v1753
    %2457 = vmatpush1.bf16.xpose.msra.mxu0 %v1752
    %2458 = vmatprep.subr.bf16.mxu0 %v1729
    %2459 = vmatpush1.bf16.xpose.msra.mxu0 %v1728
    %2460 = vmatprep.subr.bf16.mxu0 %v1705
    %2461 = vmatpush1.bf16.xpose.msra.mxu0 %v1704
    %2462 = vmatprep.subr.bf16.mxu0 %v1681
    %2463 = vmatpush1.bf16.xpose.msra.mxu0 %v1680
    %2464 = vmatprep.subr.bf16.mxu0 %v2041
    %2465 = vmatpush2.bf16.xpose.msra.mxu0 %v2040
    %2466 = vmatprep.subr.bf16.mxu0 %v2017
    %2467 = vmatpush2.bf16.xpose.msra.mxu0 %v2016
    %2468 = vmatprep.subr.bf16.mxu0 %v1993
    %2469 = vmatpush2.bf16.xpose.msra.mxu0 %v1992
    %2470 = vmatprep.subr.bf16.mxu0 %v1969
    %2471 = vmatpush2.bf16.xpose.msra.mxu0 %v1968
    %2472 = vmatprep.subr.bf16.mxu0 %v1945
    %2473 = vmatpush2.bf16.xpose.msra.mxu0 %v1944
    %2474 = vmatprep.subr.bf16.mxu0 %v1921
    %2475 = vmatpush2.bf16.xpose.msra.mxu0 %v1920
    %2476 = vmatprep.subr.bf16.mxu0 %v1897
    %2477 = vmatpush2.bf16.xpose.msra.mxu0 %v1896
    %2478 = vmatprep.subr.bf16.mxu0 %v1873
    %2479 = vmatpush2.bf16.xpose.msra.mxu0 %v1872
    %2480 = vmatprep.mubr.bf16.mxu0 %v109
    %2481 = vmatmul.mubr.bf16.gmra.mxu0 %v108
    %v2482 = vpop.f32.mrf.mxu0
    %v2483 = vadd.f32 %v521, %v2482
    %v2484 = vpop.f32.mrf.mxu0
    %v2485 = vadd.f32 %v525, %v2484
    %v2486 = vpop.f32.mrf.mxu0
    %v2487 = vpop.f32.mrf.mxu0
    %2488 = vdwg.mxu0
    %2489 = vmatprep.subr.bf16.mxu0 %v1851
    %2490 = vmatpush1.bf16.xpose.msra.mxu0 %v1850
    %2491 = vmatprep.subr.bf16.mxu0 %v1827
    %2492 = vmatpush1.bf16.xpose.msra.mxu0 %v1826
    %2493 = vmatprep.subr.bf16.mxu0 %v1803
    %2494 = vmatpush1.bf16.xpose.msra.mxu0 %v1802
    %2495 = vmatprep.subr.bf16.mxu0 %v1779
    %2496 = vmatpush1.bf16.xpose.msra.mxu0 %v1778
    %2497 = vmatprep.subr.bf16.mxu0 %v1755
    %2498 = vmatpush1.bf16.xpose.msra.mxu0 %v1754
    %2499 = vmatprep.subr.bf16.mxu0 %v1731
    %2500 = vmatpush1.bf16.xpose.msra.mxu0 %v1730
    %2501 = vmatprep.subr.bf16.mxu0 %v1707
    %2502 = vmatpush1.bf16.xpose.msra.mxu0 %v1706
    %2503 = vmatprep.subr.bf16.mxu0 %v1683
    %2504 = vmatpush1.bf16.xpose.msra.mxu0 %v1682
    %2505 = vmatprep.subr.bf16.mxu0 %v2043
    %2506 = vmatpush2.bf16.xpose.msra.mxu0 %v2042
    %2507 = vmatprep.subr.bf16.mxu0 %v2019
    %2508 = vmatpush2.bf16.xpose.msra.mxu0 %v2018
    %2509 = vmatprep.subr.bf16.mxu0 %v1995
    %2510 = vmatpush2.bf16.xpose.msra.mxu0 %v1994
    %2511 = vmatprep.subr.bf16.mxu0 %v1971
    %2512 = vmatpush2.bf16.xpose.msra.mxu0 %v1970
    %2513 = vmatprep.subr.bf16.mxu0 %v1947
    %2514 = vmatpush2.bf16.xpose.msra.mxu0 %v1946
    %2515 = vmatprep.subr.bf16.mxu0 %v1923
    %2516 = vmatpush2.bf16.xpose.msra.mxu0 %v1922
    %2517 = vmatprep.subr.bf16.mxu0 %v1899
    %2518 = vmatpush2.bf16.xpose.msra.mxu0 %v1898
    %2519 = vmatprep.subr.bf16.mxu0 %v1875
    %2520 = vmatpush2.bf16.xpose.msra.mxu0 %v1874
    %2521 = vmatprep.mubr.bf16.mxu0 %v111
    %2522 = vmatmul.mubr.bf16.gmra.mxu0 %v110
    %v2523 = vpop.f32.mrf.mxu0
    %v2524 = vadd.f32 %v2483, %v2523
    %v2525 = vpop.f32.mrf.mxu0
    %v2526 = vadd.f32 %v2485, %v2525
    %v2527 = vpop.f32.mrf.mxu0
    %v2528 = vpop.f32.mrf.mxu0
    %2529 = vdwg.mxu0
    %2530 = vmatprep.subr.bf16.mxu0 %v1853
    %2531 = vmatpush1.bf16.xpose.msra.mxu0 %v1852
    %2532 = vmatprep.subr.bf16.mxu0 %v1829
    %2533 = vmatpush1.bf16.xpose.msra.mxu0 %v1828
    %2534 = vmatprep.subr.bf16.mxu0 %v1805
    %2535 = vmatpush1.bf16.xpose.msra.mxu0 %v1804
    %2536 = vmatprep.subr.bf16.mxu0 %v1781
    %2537 = vmatpush1.bf16.xpose.msra.mxu0 %v1780
    %2538 = vmatprep.subr.bf16.mxu0 %v1757
    %2539 = vmatpush1.bf16.xpose.msra.mxu0 %v1756
    %2540 = vmatprep.subr.bf16.mxu0 %v1733
    %2541 = vmatpush1.bf16.xpose.msra.mxu0 %v1732
    %2542 = vmatprep.subr.bf16.mxu0 %v1709
    %2543 = vmatpush1.bf16.xpose.msra.mxu0 %v1708
    %2544 = vmatprep.subr.bf16.mxu0 %v1685
    %2545 = vmatpush1.bf16.xpose.msra.mxu0 %v1684
    %2546 = vmatprep.subr.bf16.mxu0 %v2045
    %2547 = vmatpush2.bf16.xpose.msra.mxu0 %v2044
    %2548 = vmatprep.subr.bf16.mxu0 %v2021
    %2549 = vmatpush2.bf16.xpose.msra.mxu0 %v2020
    %2550 = vmatprep.subr.bf16.mxu0 %v1997
    %2551 = vmatpush2.bf16.xpose.msra.mxu0 %v1996
    %2552 = vmatprep.subr.bf16.mxu0 %v1973
    %2553 = vmatpush2.bf16.xpose.msra.mxu0 %v1972
    %2554 = vmatprep.subr.bf16.mxu0 %v1949
    %2555 = vmatpush2.bf16.xpose.msra.mxu0 %v1948
    %2556 = vmatprep.subr.bf16.mxu0 %v1925
    %2557 = vmatpush2.bf16.xpose.msra.mxu0 %v1924
    %2558 = vmatprep.subr.bf16.mxu0 %v1901
    %2559 = vmatpush2.bf16.xpose.msra.mxu0 %v1900
    %2560 = vmatprep.subr.bf16.mxu0 %v1877
    %2561 = vmatpush2.bf16.xpose.msra.mxu0 %v1876
    %2562 = vmatprep.mubr.bf16.mxu0 %v113
    %2563 = vmatmul.mubr.bf16.gmra.mxu0 %v112
    %v2564 = vpop.f32.mrf.mxu0
    %v2565 = vadd.f32 %v2524, %v2564
    %v2566 = vpop.f32.mrf.mxu0
    %v2567 = vadd.f32 %v2526, %v2566
    %v2568 = vpop.f32.mrf.mxu0
    %v2569 = vpop.f32.mrf.mxu0
    %2570 = vdwg.mxu0
    %2571 = vmatprep.subr.bf16.mxu0 %v1855
    %2572 = vmatpush1.bf16.xpose.msra.mxu0 %v1854
    %2573 = vmatprep.subr.bf16.mxu0 %v1831
    %2574 = vmatpush1.bf16.xpose.msra.mxu0 %v1830
    %2575 = vmatprep.subr.bf16.mxu0 %v1807
    %2576 = vmatpush1.bf16.xpose.msra.mxu0 %v1806
    %2577 = vmatprep.subr.bf16.mxu0 %v1783
    %2578 = vmatpush1.bf16.xpose.msra.mxu0 %v1782
    %2579 = vmatprep.subr.bf16.mxu0 %v1759
    %2580 = vmatpush1.bf16.xpose.msra.mxu0 %v1758
    %2581 = vmatprep.subr.bf16.mxu0 %v1735
    %2582 = vmatpush1.bf16.xpose.msra.mxu0 %v1734
    %2583 = vmatprep.subr.bf16.mxu0 %v1711
    %2584 = vmatpush1.bf16.xpose.msra.mxu0 %v1710
    %2585 = vmatprep.subr.bf16.mxu0 %v1687
    %2586 = vmatpush1.bf16.xpose.msra.mxu0 %v1686
    %2587 = vmatprep.subr.bf16.mxu0 %v2047
    %2588 = vmatpush2.bf16.xpose.msra.mxu0 %v2046
    %2589 = vmatprep.subr.bf16.mxu0 %v2023
    %2590 = vmatpush2.bf16.xpose.msra.mxu0 %v2022
    %2591 = vmatprep.subr.bf16.mxu0 %v1999
    %2592 = vmatpush2.bf16.xpose.msra.mxu0 %v1998
    %2593 = vmatprep.subr.bf16.mxu0 %v1975
    %2594 = vmatpush2.bf16.xpose.msra.mxu0 %v1974
    %2595 = vmatprep.subr.bf16.mxu0 %v1951
    %2596 = vmatpush2.bf16.xpose.msra.mxu0 %v1950
    %2597 = vmatprep.subr.bf16.mxu0 %v1927
    %2598 = vmatpush2.bf16.xpose.msra.mxu0 %v1926
    %2599 = vmatprep.subr.bf16.mxu0 %v1903
    %2600 = vmatpush2.bf16.xpose.msra.mxu0 %v1902
    %2601 = vmatprep.subr.bf16.mxu0 %v1879
    %2602 = vmatpush2.bf16.xpose.msra.mxu0 %v1878
    %2603 = vmatprep.mubr.bf16.mxu0 %v115
    %2604 = vmatmul.mubr.bf16.gmra.mxu0 %v114
    %v2605 = vpop.f32.mrf.mxu0
    %v2606 = vadd.f32 %v2565, %v2605
    %v2607 = vpop.f32.mrf.mxu0
    %v2608 = vadd.f32 %v2567, %v2607
    %v2609 = vpop.f32.mrf.mxu0
    %v2610 = vpop.f32.mrf.mxu0
    %2611 = vdwg.mxu0
    %2612 = vmatprep.subr.bf16.mxu0 %v1857
    %2613 = vmatpush1.bf16.xpose.msra.mxu0 %v1856
    %2614 = vmatprep.subr.bf16.mxu0 %v1833
    %2615 = vmatpush1.bf16.xpose.msra.mxu0 %v1832
    %2616 = vmatprep.subr.bf16.mxu0 %v1809
    %2617 = vmatpush1.bf16.xpose.msra.mxu0 %v1808
    %2618 = vmatprep.subr.bf16.mxu0 %v1785
    %2619 = vmatpush1.bf16.xpose.msra.mxu0 %v1784
    %2620 = vmatprep.subr.bf16.mxu0 %v1761
    %2621 = vmatpush1.bf16.xpose.msra.mxu0 %v1760
    %2622 = vmatprep.subr.bf16.mxu0 %v1737
    %2623 = vmatpush1.bf16.xpose.msra.mxu0 %v1736
    %2624 = vmatprep.subr.bf16.mxu0 %v1713
    %2625 = vmatpush1.bf16.xpose.msra.mxu0 %v1712
    %2626 = vmatprep.subr.bf16.mxu0 %v1689
    %2627 = vmatpush1.bf16.xpose.msra.mxu0 %v1688
    %2628 = vmatprep.subr.bf16.mxu0 %v2049
    %2629 = vmatpush2.bf16.xpose.msra.mxu0 %v2048
    %2630 = vmatprep.subr.bf16.mxu0 %v2025
    %2631 = vmatpush2.bf16.xpose.msra.mxu0 %v2024
    %2632 = vmatprep.subr.bf16.mxu0 %v2001
    %2633 = vmatpush2.bf16.xpose.msra.mxu0 %v2000
    %2634 = vmatprep.subr.bf16.mxu0 %v1977
    %2635 = vmatpush2.bf16.xpose.msra.mxu0 %v1976
    %2636 = vmatprep.subr.bf16.mxu0 %v1953
    %2637 = vmatpush2.bf16.xpose.msra.mxu0 %v1952
    %2638 = vmatprep.subr.bf16.mxu0 %v1929
    %2639 = vmatpush2.bf16.xpose.msra.mxu0 %v1928
    %2640 = vmatprep.subr.bf16.mxu0 %v1905
    %2641 = vmatpush2.bf16.xpose.msra.mxu0 %v1904
    %2642 = vmatprep.subr.bf16.mxu0 %v1881
    %2643 = vmatpush2.bf16.xpose.msra.mxu0 %v1880
    %2644 = vmatprep.mubr.bf16.mxu0 %v117
    %2645 = vmatmul.mubr.bf16.gmra.mxu0 %v116
    %v2646 = vpop.f32.mrf.mxu0
    %v2647 = vadd.f32 %v2606, %v2646
    %v2648 = vpop.f32.mrf.mxu0
    %v2649 = vadd.f32 %v2608, %v2648
    %v2650 = vpop.f32.mrf.mxu0
    %v2651 = vpop.f32.mrf.mxu0
    %2652 = vdwg.mxu0
    %2653 = vmatprep.subr.bf16.mxu0 %v1859
    %2654 = vmatpush1.bf16.xpose.msra.mxu0 %v1858
    %2655 = vmatprep.subr.bf16.mxu0 %v1835
    %2656 = vmatpush1.bf16.xpose.msra.mxu0 %v1834
    %2657 = vmatprep.subr.bf16.mxu0 %v1811
    %2658 = vmatpush1.bf16.xpose.msra.mxu0 %v1810
    %2659 = vmatprep.subr.bf16.mxu0 %v1787
    %2660 = vmatpush1.bf16.xpose.msra.mxu0 %v1786
    %2661 = vmatprep.subr.bf16.mxu0 %v1763
    %2662 = vmatpush1.bf16.xpose.msra.mxu0 %v1762
    %2663 = vmatprep.subr.bf16.mxu0 %v1739
    %2664 = vmatpush1.bf16.xpose.msra.mxu0 %v1738
    %2665 = vmatprep.subr.bf16.mxu0 %v1715
    %2666 = vmatpush1.bf16.xpose.msra.mxu0 %v1714
    %2667 = vmatprep.subr.bf16.mxu0 %v1691
    %2668 = vmatpush1.bf16.xpose.msra.mxu0 %v1690
    %2669 = vmatprep.subr.bf16.mxu0 %v2051
    %2670 = vmatpush2.bf16.xpose.msra.mxu0 %v2050
    %2671 = vmatprep.subr.bf16.mxu0 %v2027
    %2672 = vmatpush2.bf16.xpose.msra.mxu0 %v2026
    %2673 = vmatprep.subr.bf16.mxu0 %v2003
    %2674 = vmatpush2.bf16.xpose.msra.mxu0 %v2002
    %2675 = vmatprep.subr.bf16.mxu0 %v1979
    %2676 = vmatpush2.bf16.xpose.msra.mxu0 %v1978
    %2677 = vmatprep.subr.bf16.mxu0 %v1955
    %2678 = vmatpush2.bf16.xpose.msra.mxu0 %v1954
    %2679 = vmatprep.subr.bf16.mxu0 %v1931
    %2680 = vmatpush2.bf16.xpose.msra.mxu0 %v1930
    %2681 = vmatprep.subr.bf16.mxu0 %v1907
    %2682 = vmatpush2.bf16.xpose.msra.mxu0 %v1906
    %2683 = vmatprep.subr.bf16.mxu0 %v1883
    %2684 = vmatpush2.bf16.xpose.msra.mxu0 %v1882
    %2685 = vmatprep.mubr.bf16.mxu0 %v119
    %2686 = vmatmul.mubr.bf16.gmra.mxu0 %v118
    %v2687 = vpop.f32.mrf.mxu0
    %v2688 = vadd.f32 %v2647, %v2687
    %v2689 = vpop.f32.mrf.mxu0
    %v2690 = vadd.f32 %v2649, %v2689
    %v2691 = vpop.f32.mrf.mxu0
    %v2692 = vpop.f32.mrf.mxu0
    %2693 = vdwg.mxu0
    %2694 = vmatprep.subr.bf16.mxu0 %v1861
    %2695 = vmatpush1.bf16.xpose.msra.mxu0 %v1860
    %2696 = vmatprep.subr.bf16.mxu0 %v1837
    %2697 = vmatpush1.bf16.xpose.msra.mxu0 %v1836
    %2698 = vmatprep.subr.bf16.mxu0 %v1813
    %2699 = vmatpush1.bf16.xpose.msra.mxu0 %v1812
    %2700 = vmatprep.subr.bf16.mxu0 %v1789
    %2701 = vmatpush1.bf16.xpose.msra.mxu0 %v1788
    %2702 = vmatprep.subr.bf16.mxu0 %v1765
    %2703 = vmatpush1.bf16.xpose.msra.mxu0 %v1764
    %2704 = vmatprep.subr.bf16.mxu0 %v1741
    %2705 = vmatpush1.bf16.xpose.msra.mxu0 %v1740
    %2706 = vmatprep.subr.bf16.mxu0 %v1717
    %2707 = vmatpush1.bf16.xpose.msra.mxu0 %v1716
    %2708 = vmatprep.subr.bf16.mxu0 %v1693
    %2709 = vmatpush1.bf16.xpose.msra.mxu0 %v1692
    %2710 = vmatprep.subr.bf16.mxu0 %v2053
    %2711 = vmatpush2.bf16.xpose.msra.mxu0 %v2052
    %2712 = vmatprep.subr.bf16.mxu0 %v2029
    %2713 = vmatpush2.bf16.xpose.msra.mxu0 %v2028
    %2714 = vmatprep.subr.bf16.mxu0 %v2005
    %2715 = vmatpush2.bf16.xpose.msra.mxu0 %v2004
    %2716 = vmatprep.subr.bf16.mxu0 %v1981
    %2717 = vmatpush2.bf16.xpose.msra.mxu0 %v1980
    %2718 = vmatprep.subr.bf16.mxu0 %v1957
    %2719 = vmatpush2.bf16.xpose.msra.mxu0 %v1956
    %2720 = vmatprep.subr.bf16.mxu0 %v1933
    %2721 = vmatpush2.bf16.xpose.msra.mxu0 %v1932
    %2722 = vmatprep.subr.bf16.mxu0 %v1909
    %2723 = vmatpush2.bf16.xpose.msra.mxu0 %v1908
    %2724 = vmatprep.subr.bf16.mxu0 %v1885
    %2725 = vmatpush2.bf16.xpose.msra.mxu0 %v1884
    %2726 = vmatprep.mubr.bf16.mxu0 %v121
    %2727 = vmatmul.mubr.bf16.gmra.mxu0 %v120
    %v2728 = vpop.f32.mrf.mxu0
    %v2729 = vadd.f32 %v2688, %v2728
    %v2730 = vpop.f32.mrf.mxu0
    %v2731 = vadd.f32 %v2690, %v2730
    %v2732 = vpop.f32.mrf.mxu0
    %v2733 = vpop.f32.mrf.mxu0
    %2734 = vdwg.mxu0
    %2735 = vmatprep.subr.bf16.mxu0 %v1863
    %2736 = vmatpush1.bf16.xpose.msra.mxu0 %v1862
    %2737 = vmatprep.subr.bf16.mxu0 %v1839
    %2738 = vmatpush1.bf16.xpose.msra.mxu0 %v1838
    %2739 = vmatprep.subr.bf16.mxu0 %v1815
    %2740 = vmatpush1.bf16.xpose.msra.mxu0 %v1814
    %2741 = vmatprep.subr.bf16.mxu0 %v1791
    %2742 = vmatpush1.bf16.xpose.msra.mxu0 %v1790
    %2743 = vmatprep.subr.bf16.mxu0 %v1767
    %2744 = vmatpush1.bf16.xpose.msra.mxu0 %v1766
    %2745 = vmatprep.subr.bf16.mxu0 %v1743
    %2746 = vmatpush1.bf16.xpose.msra.mxu0 %v1742
    %2747 = vmatprep.subr.bf16.mxu0 %v1719
    %2748 = vmatpush1.bf16.xpose.msra.mxu0 %v1718
    %2749 = vmatprep.subr.bf16.mxu0 %v1695
    %2750 = vmatpush1.bf16.xpose.msra.mxu0 %v1694
    %2751 = vmatprep.subr.bf16.mxu0 %v2055
    %2752 = vmatpush2.bf16.xpose.msra.mxu0 %v2054
    %2753 = vmatprep.subr.bf16.mxu0 %v2031
    %2754 = vmatpush2.bf16.xpose.msra.mxu0 %v2030
    %2755 = vmatprep.subr.bf16.mxu0 %v2007
    %2756 = vmatpush2.bf16.xpose.msra.mxu0 %v2006
    %2757 = vmatprep.subr.bf16.mxu0 %v1983
    %2758 = vmatpush2.bf16.xpose.msra.mxu0 %v1982
    %2759 = vmatprep.subr.bf16.mxu0 %v1959
    %2760 = vmatpush2.bf16.xpose.msra.mxu0 %v1958
    %2761 = vmatprep.subr.bf16.mxu0 %v1935
    %2762 = vmatpush2.bf16.xpose.msra.mxu0 %v1934
    %2763 = vmatprep.subr.bf16.mxu0 %v1911
    %2764 = vmatpush2.bf16.xpose.msra.mxu0 %v1910
    %2765 = vmatprep.subr.bf16.mxu0 %v1887
    %2766 = vmatpush2.bf16.xpose.msra.mxu0 %v1886
    %2767 = vmatprep.mubr.bf16.mxu0 %v123
    %2768 = vmatmul.mubr.bf16.gmra.mxu0 %v122
    %v2769 = vpop.f32.mrf.mxu0
    %v2770 = vadd.f32 %v2729, %v2769
    %v2771 = vpop.f32.mrf.mxu0
    %v2772 = vadd.f32 %v2731, %v2771
    %v2773 = vpop.f32.mrf.mxu0
    %v2774 = vpop.f32.mrf.mxu0
    %2775 = vdwg.mxu0
    %2776 = vmatprep.subr.bf16.mxu0 %v1865
    %2777 = vmatpush1.bf16.xpose.msra.mxu0 %v1864
    %2778 = vmatprep.subr.bf16.mxu0 %v1841
    %2779 = vmatpush1.bf16.xpose.msra.mxu0 %v1840
    %2780 = vmatprep.subr.bf16.mxu0 %v1817
    %2781 = vmatpush1.bf16.xpose.msra.mxu0 %v1816
    %2782 = vmatprep.subr.bf16.mxu0 %v1793
    %2783 = vmatpush1.bf16.xpose.msra.mxu0 %v1792
    %2784 = vmatprep.subr.bf16.mxu0 %v1769
    %2785 = vmatpush1.bf16.xpose.msra.mxu0 %v1768
    %2786 = vmatprep.subr.bf16.mxu0 %v1745
    %2787 = vmatpush1.bf16.xpose.msra.mxu0 %v1744
    %2788 = vmatprep.subr.bf16.mxu0 %v1721
    %2789 = vmatpush1.bf16.xpose.msra.mxu0 %v1720
    %2790 = vmatprep.subr.bf16.mxu0 %v1697
    %2791 = vmatpush1.bf16.xpose.msra.mxu0 %v1696
    %2792 = vmatprep.subr.bf16.mxu0 %v2057
    %2793 = vmatpush2.bf16.xpose.msra.mxu0 %v2056
    %2794 = vmatprep.subr.bf16.mxu0 %v2033
    %2795 = vmatpush2.bf16.xpose.msra.mxu0 %v2032
    %2796 = vmatprep.subr.bf16.mxu0 %v2009
    %2797 = vmatpush2.bf16.xpose.msra.mxu0 %v2008
    %2798 = vmatprep.subr.bf16.mxu0 %v1985
    %2799 = vmatpush2.bf16.xpose.msra.mxu0 %v1984
    %2800 = vmatprep.subr.bf16.mxu0 %v1961
    %2801 = vmatpush2.bf16.xpose.msra.mxu0 %v1960
    %2802 = vmatprep.subr.bf16.mxu0 %v1937
    %2803 = vmatpush2.bf16.xpose.msra.mxu0 %v1936
    %2804 = vmatprep.subr.bf16.mxu0 %v1913
    %2805 = vmatpush2.bf16.xpose.msra.mxu0 %v1912
    %2806 = vmatprep.subr.bf16.mxu0 %v1889
    %2807 = vmatpush2.bf16.xpose.msra.mxu0 %v1888
    %2808 = vmatprep.mubr.bf16.mxu0 %v125
    %2809 = vmatmul.mubr.bf16.gmra.mxu0 %v124
    %v2810 = vpop.f32.mrf.mxu0
    %v2811 = vadd.f32 %v2770, %v2810
    %v2812 = vpop.f32.mrf.mxu0
    %v2813 = vadd.f32 %v2772, %v2812
    %v2814 = vpop.f32.mrf.mxu0
    %v2815 = vpop.f32.mrf.mxu0
    %2816 = vdwg.mxu0
    %2817 = vmatprep.subr.bf16.mxu0 %v1867
    %2818 = vmatpush1.bf16.xpose.msra.mxu0 %v1866
    %2819 = vmatprep.subr.bf16.mxu0 %v1843
    %2820 = vmatpush1.bf16.xpose.msra.mxu0 %v1842
    %2821 = vmatprep.subr.bf16.mxu0 %v1819
    %2822 = vmatpush1.bf16.xpose.msra.mxu0 %v1818
    %2823 = vmatprep.subr.bf16.mxu0 %v1795
    %2824 = vmatpush1.bf16.xpose.msra.mxu0 %v1794
    %2825 = vmatprep.subr.bf16.mxu0 %v1771
    %2826 = vmatpush1.bf16.xpose.msra.mxu0 %v1770
    %2827 = vmatprep.subr.bf16.mxu0 %v1747
    %2828 = vmatpush1.bf16.xpose.msra.mxu0 %v1746
    %2829 = vmatprep.subr.bf16.mxu0 %v1723
    %2830 = vmatpush1.bf16.xpose.msra.mxu0 %v1722
    %2831 = vmatprep.subr.bf16.mxu0 %v1699
    %2832 = vmatpush1.bf16.xpose.msra.mxu0 %v1698
    %2833 = vmatprep.subr.bf16.mxu0 %v2059
    %2834 = vmatpush2.bf16.xpose.msra.mxu0 %v2058
    %2835 = vmatprep.subr.bf16.mxu0 %v2035
    %2836 = vmatpush2.bf16.xpose.msra.mxu0 %v2034
    %2837 = vmatprep.subr.bf16.mxu0 %v2011
    %2838 = vmatpush2.bf16.xpose.msra.mxu0 %v2010
    %2839 = vmatprep.subr.bf16.mxu0 %v1987
    %2840 = vmatpush2.bf16.xpose.msra.mxu0 %v1986
    %2841 = vmatprep.subr.bf16.mxu0 %v1963
    %2842 = vmatpush2.bf16.xpose.msra.mxu0 %v1962
    %2843 = vmatprep.subr.bf16.mxu0 %v1939
    %2844 = vmatpush2.bf16.xpose.msra.mxu0 %v1938
    %2845 = vmatprep.subr.bf16.mxu0 %v1915
    %2846 = vmatpush2.bf16.xpose.msra.mxu0 %v1914
    %2847 = vmatprep.subr.bf16.mxu0 %v1891
    %2848 = vmatpush2.bf16.xpose.msra.mxu0 %v1890
    %2849 = vmatprep.mubr.bf16.mxu0 %v127
    %2850 = vmatmul.mubr.bf16.gmra.mxu0 %v126
    %v2851 = vpop.f32.mrf.mxu0
    %v2852 = vadd.f32 %v2811, %v2851
    %v2853 = vpop.f32.mrf.mxu0
    %v2854 = vadd.f32 %v2813, %v2853
    %v2855 = vpop.f32.mrf.mxu0
    %v2856 = vpop.f32.mrf.mxu0
    %2857 = vdwg.mxu0
    %2858 = vmatprep.subr.bf16.mxu0 %v1869
    %2859 = vmatpush1.bf16.xpose.msra.mxu0 %v1868
    %2860 = vmatprep.subr.bf16.mxu0 %v1845
    %2861 = vmatpush1.bf16.xpose.msra.mxu0 %v1844
    %2862 = vmatprep.subr.bf16.mxu0 %v1821
    %2863 = vmatpush1.bf16.xpose.msra.mxu0 %v1820
    %2864 = vmatprep.subr.bf16.mxu0 %v1797
    %2865 = vmatpush1.bf16.xpose.msra.mxu0 %v1796
    %2866 = vmatprep.subr.bf16.mxu0 %v1773
    %2867 = vmatpush1.bf16.xpose.msra.mxu0 %v1772
    %2868 = vmatprep.subr.bf16.mxu0 %v1749
    %2869 = vmatpush1.bf16.xpose.msra.mxu0 %v1748
    %2870 = vmatprep.subr.bf16.mxu0 %v1725
    %2871 = vmatpush1.bf16.xpose.msra.mxu0 %v1724
    %2872 = vmatprep.subr.bf16.mxu0 %v1701
    %2873 = vmatpush1.bf16.xpose.msra.mxu0 %v1700
    %2874 = vmatprep.subr.bf16.mxu0 %v2061
    %2875 = vmatpush2.bf16.xpose.msra.mxu0 %v2060
    %2876 = vmatprep.subr.bf16.mxu0 %v2037
    %2877 = vmatpush2.bf16.xpose.msra.mxu0 %v2036
    %2878 = vmatprep.subr.bf16.mxu0 %v2013
    %2879 = vmatpush2.bf16.xpose.msra.mxu0 %v2012
    %2880 = vmatprep.subr.bf16.mxu0 %v1989
    %2881 = vmatpush2.bf16.xpose.msra.mxu0 %v1988
    %2882 = vmatprep.subr.bf16.mxu0 %v1965
    %2883 = vmatpush2.bf16.xpose.msra.mxu0 %v1964
    %2884 = vmatprep.subr.bf16.mxu0 %v1941
    %2885 = vmatpush2.bf16.xpose.msra.mxu0 %v1940
    %2886 = vmatprep.subr.bf16.mxu0 %v1917
    %2887 = vmatpush2.bf16.xpose.msra.mxu0 %v1916
    %2888 = vmatprep.subr.bf16.mxu0 %v1893
    %2889 = vmatpush2.bf16.xpose.msra.mxu0 %v1892
    %2890 = vmatprep.mubr.bf16.mxu0 %v129
    %2891 = vmatmul.mubr.bf16.gmra.mxu0 %v128
    %v2892 = vpop.f32.mrf.mxu0
    %v2893 = vadd.f32 %v2852, %v2892
    %v2894 = vpop.f32.mrf.mxu0
    %v2895 = vadd.f32 %v2854, %v2894
    %v2896 = vpop.f32.mrf.mxu0
    %v2897 = vpop.f32.mrf.mxu0
    %2898 = vdwg.mxu0
    %2899 = vmatprep.subr.bf16.mxu0 %v1871
    %2900 = vmatpush1.bf16.xpose.msra.mxu0 %v1870
    %2901 = vmatprep.subr.bf16.mxu0 %v1847
    %2902 = vmatpush1.bf16.xpose.msra.mxu0 %v1846
    %2903 = vmatprep.subr.bf16.mxu0 %v1823
    %2904 = vmatpush1.bf16.xpose.msra.mxu0 %v1822
    %2905 = vmatprep.subr.bf16.mxu0 %v1799
    %2906 = vmatpush1.bf16.xpose.msra.mxu0 %v1798
    %2907 = vmatprep.subr.bf16.mxu0 %v1775
    %2908 = vmatpush1.bf16.xpose.msra.mxu0 %v1774
    %2909 = vmatprep.subr.bf16.mxu0 %v1751
    %2910 = vmatpush1.bf16.xpose.msra.mxu0 %v1750
    %2911 = vmatprep.subr.bf16.mxu0 %v1727
    %2912 = vmatpush1.bf16.xpose.msra.mxu0 %v1726
    %2913 = vmatprep.subr.bf16.mxu0 %v1703
    %2914 = vmatpush1.bf16.xpose.msra.mxu0 %v1702
    %2915 = vmatprep.subr.bf16.mxu0 %v2063
    %2916 = vmatpush2.bf16.xpose.msra.mxu0 %v2062
    %2917 = vmatprep.subr.bf16.mxu0 %v2039
    %2918 = vmatpush2.bf16.xpose.msra.mxu0 %v2038
    %2919 = vmatprep.subr.bf16.mxu0 %v2015
    %2920 = vmatpush2.bf16.xpose.msra.mxu0 %v2014
    %2921 = vmatprep.subr.bf16.mxu0 %v1991
    %2922 = vmatpush2.bf16.xpose.msra.mxu0 %v1990
    %2923 = vmatprep.subr.bf16.mxu0 %v1967
    %2924 = vmatpush2.bf16.xpose.msra.mxu0 %v1966
    %2925 = vmatprep.subr.bf16.mxu0 %v1943
    %2926 = vmatpush2.bf16.xpose.msra.mxu0 %v1942
    %2927 = vmatprep.subr.bf16.mxu0 %v1919
    %2928 = vmatpush2.bf16.xpose.msra.mxu0 %v1918
    %2929 = vmatprep.subr.bf16.mxu0 %v1895
    %2930 = vmatpush2.bf16.xpose.msra.mxu0 %v1894
    %2931 = vmatprep.mubr.bf16.mxu0 %v131
    %2932 = vmatmul.mubr.bf16.gmra.mxu0 %v130
    %v2933 = vpop.f32.mrf.mxu0
    %v2934 = vadd.f32 %v2893, %v2933
    %v2935 = vpop.f32.mrf.mxu0
    %v2936 = vadd.f32 %v2895, %v2935
    %v2937 = vpop.f32.mrf.mxu0
    %v2938 = vpop.f32.mrf.mxu0
    %2939 = vdwg.mxu0
    %v2940 = vmax.f32 %v2934, 0.0
    %v2941 = vmax.f32 %v2936, 0.0
    %v2942 = vpack.c.bf16 %v2940, %v2940
    %v2943 = vpack.c.bf16 %v2941, %v2941
    %v2944 = vld [vmem:[#allocation8] sm:$0xff]
    %v2945 = vld [vmem:[#allocation8 + $0x8] sm:$0xff]
    %v2946 = vld [vmem:[#allocation8 + $0x10] sm:$0xff]
    %v2947 = vld [vmem:[#allocation8 + $0x18] sm:$0xff]
    %v2948 = vld [vmem:[#allocation8 + $0x20] sm:$0xff]
    %v2949 = vld [vmem:[#allocation8 + $0x28] sm:$0xff]
    %v2950 = vld [vmem:[#allocation8 + $0x30] sm:$0xff]
    %v2951 = vld [vmem:[#allocation8 + $0x38] sm:$0xff]
    %v2952 = vld [vmem:[#allocation8 + $0x40] sm:$0xff]
    %v2953 = vld [vmem:[#allocation8 + $0x48] sm:$0xff]
    %v2954 = vld [vmem:[#allocation8 + $0x50] sm:$0xff]
    %v2955 = vld [vmem:[#allocation8 + $0x58] sm:$0xff]
    %v2956 = vld [vmem:[#allocation8 + $0x60] sm:$0xff]
    %v2957 = vld [vmem:[#allocation8 + $0x68] sm:$0xff]
    %v2958 = vld [vmem:[#allocation8 + $0x70] sm:$0xff]
    %v2959 = vld [vmem:[#allocation8 + $0x78] sm:$0xff]
    %v2960 = vld [vmem:[#allocation10] sm:$0x1]
    %v2962 = vlaneseq
    %v2963 = vshrl.u32 %v2962, 7
    %v2964 = vsub.s32 0, %v2963
    %v2965 = vrot.slane %v2960, %v2964
    %v2983 = vunpack.c.l.b16 %v2944
    %v2984 = vunpack.c.h.b16 %v2944
    %v2985 = vunpack.c.l.b16 %v2945
    %v2986 = vunpack.c.h.b16 %v2945
    %v2987 = vunpack.c.l.b16 %v2946
    %v2988 = vunpack.c.h.b16 %v2946
    %v2989 = vunpack.c.l.b16 %v2947
    %v2990 = vunpack.c.h.b16 %v2947
    %v2991 = vunpack.c.l.b16 %v2948
    %v2992 = vunpack.c.h.b16 %v2948
    %v2993 = vunpack.c.l.b16 %v2949
    %v2994 = vunpack.c.h.b16 %v2949
    %v2995 = vunpack.c.l.b16 %v2950
    %v2996 = vunpack.c.h.b16 %v2950
    %v2997 = vunpack.c.l.b16 %v2951
    %v2998 = vunpack.c.h.b16 %v2951
    %v2999 = vunpack.c.l.b16 %v2952
    %v3000 = vunpack.c.h.b16 %v2952
    %v3001 = vunpack.c.l.b16 %v2953
    %v3002 = vunpack.c.h.b16 %v2953
    %v3003 = vunpack.c.l.b16 %v2954
    %v3004 = vunpack.c.h.b16 %v2954
    %v3005 = vunpack.c.l.b16 %v2955
    %v3006 = vunpack.c.h.b16 %v2955
    %v3007 = vunpack.c.l.b16 %v2956
    %v3008 = vunpack.c.h.b16 %v2956
    %v3009 = vunpack.c.l.b16 %v2957
    %v3010 = vunpack.c.h.b16 %v2957
    %v3011 = vunpack.c.l.b16 %v2958
    %v3012 = vunpack.c.h.b16 %v2958
    %v3013 = vunpack.c.l.b16 %v2959
    %v3014 = vunpack.c.h.b16 %v2959
    %v3015 = vpack.c.b16 %v2985, %v2983
    %v3016 = vpack.c.b16 %v2986, %v2984
    %v3017 = vpack.c.b16 %v2989, %v2987
    %v3018 = vpack.c.b16 %v2990, %v2988
    %v3019 = vpack.c.b16 %v2993, %v2991
    %v3020 = vpack.c.b16 %v2994, %v2992
    %v3021 = vpack.c.b16 %v2997, %v2995
    %v3022 = vpack.c.b16 %v2998, %v2996
    %v3023 = vpack.c.b16 %v3001, %v2999
    %v3024 = vpack.c.b16 %v3002, %v3000
    %v3025 = vpack.c.b16 %v3005, %v3003
    %v3026 = vpack.c.b16 %v3006, %v3004
    %v3027 = vpack.c.b16 %v3009, %v3007
    %v3028 = vpack.c.b16 %v3010, %v3008
    %v3029 = vpack.c.b16 %v3013, %v3011
    %v3030 = vpack.c.b16 %v3014, %v3012
    %3047 = vmatprep.subr.bf16.mxu0 %v3030
    %3048 = vmatpush1.bf16.xpose.msra.mxu0 %v3029
    %3049 = vmatprep.subr.bf16.mxu0 %v3028
    %3050 = vmatpush1.bf16.xpose.msra.mxu0 %v3027
    %3051 = vmatprep.subr.bf16.mxu0 %v3026
    %3052 = vmatpush1.bf16.xpose.msra.mxu0 %v3025
    %3053 = vmatprep.subr.bf16.mxu0 %v3024
    %3054 = vmatpush1.bf16.xpose.msra.mxu0 %v3023
    %3055 = vmatprep.subr.bf16.mxu0 %v3022
    %3056 = vmatpush1.bf16.xpose.msra.mxu0 %v3021
    %3057 = vmatprep.subr.bf16.mxu0 %v3020
    %3058 = vmatpush1.bf16.xpose.msra.mxu0 %v3019
    %3059 = vmatprep.subr.bf16.mxu0 %v3018
    %3060 = vmatpush1.bf16.xpose.msra.mxu0 %v3017
    %3061 = vmatprep.subr.bf16.mxu0 %v3016
    %3062 = vmatpush1.bf16.xpose.msra.mxu0 %v3015
    %3063 = vmatprep.subr.bf16.mxu0 0
    %3064 = vmatpush2.bf16.xpose.msra.mxu0 0
    %3065 = vmatprep.subr.bf16.mxu0 0
    %3066 = vmatpush2.bf16.xpose.msra.mxu0 0
    %3067 = vmatprep.subr.bf16.mxu0 0
    %3068 = vmatpush2.bf16.xpose.msra.mxu0 0
    %3069 = vmatprep.subr.bf16.mxu0 0
    %3070 = vmatpush2.bf16.xpose.msra.mxu0 0
    %3071 = vmatprep.subr.bf16.mxu0 0
    %3072 = vmatpush2.bf16.xpose.msra.mxu0 0
    %3073 = vmatprep.subr.bf16.mxu0 0
    %3074 = vmatpush2.bf16.xpose.msra.mxu0 0
    %3075 = vmatprep.subr.bf16.mxu0 0
    %3076 = vmatpush2.bf16.xpose.msra.mxu0 0
    %3077 = vmatprep.subr.bf16.mxu0 0
    %3078 = vmatpush2.bf16.xpose.msra.mxu0 0
    %3079 = vmatprep.mubr.bf16.mxu0 %v2943
    %3080 = vmatmul.mubr.bf16.gmra.mxu0 %v2942
    %v3081 = vpop.f32.mrf.mxu0
    %v3082 = vadd.f32 %v2965, %v3081
    %v3083 = vpop.f32.mrf.mxu0
    %v3084 = vpop.f32.mrf.mxu0
    %v3085 = vpop.f32.mrf.mxu0
    %3086 = vdwg.mxu0
    %3087 = vst [vmem:[#allocation11] sm:$0xff] %v3082
    // Predicated region
    $region42: #{mlp_forward.1} parent=1 // pred_check
      _
    $region43: #{mlp_forward.1} parent=1 // pred_check_branch
      %3089 = sbr.rel (0) target = $region45
    $region44: #{mlp_forward.1} parent=1 // pred_region
      %s3091 = ssub.s32 128, 128
      %3092 = vsyncadd [#allocation4], %s3091
      %s3094 = sshll.u32 [#allocation11], 4
      %s3095 = int_to_ptr.vmem [resolvable:$true] %s3094
      %3097 = dma.vmem_to_hbm [thread:$0]  %s3095, 128, %s5, [#allocation4]
    $region45: #{mlp_forward.1} parent=1 // pred_fallthru
      _
    // Predicated region
    $region46: #{mlp_forward.1} parent=1 // pred_check
      _
    $region47: #{mlp_forward.1} parent=1 // pred_check_branch
      %3099 = sbr.rel (0) target = $region49
    $region48: #{mlp_forward.1} parent=1 // pred_region
      %3100 = dma.done [#allocation4], 128
    $region49: #{mlp_forward.1} parent=1 // pred_fallthru
      _
    %3101 = vsyncpa [#allocation3], 1
    %3102 = vsyncpa [#allocation6], 1
    %3103 = vsyncpa [#allocation9], 1
    %3104 = vsyncpa [#allocation4], 1

</llo_original>
